<compile_context>
chip_gen: v5e
topology: v5e:2x2
jax: 0.10.0
libtpu: 0.0.40
codegen_flags: <defaults>
</compile_context>

<pallas_src>
import functools

import jax
import jax.numpy as jnp
from jax.experimental import pallas as pl
from jax.experimental.pallas import tpu as pltpu


def _vae_kernel(*refs, use_mask: bool):
    if use_mask:
        (x_ref, mask_ref, eps_ref,
         w_enc_ref, b_enc_ref,
         w_mulv_ref, b_mulv_ref,
         w_d1_ref, b_d1_ref,
         w_d2_ref, b_d2_ref,
         out_ref) = refs
    else:
        (x_ref, eps_ref,
         w_enc_ref, b_enc_ref,
         w_mulv_ref, b_mulv_ref,
         w_d1_ref, b_d1_ref,
         w_d2_ref, b_d2_ref,
         out_ref) = refs
        mask_ref = None

    d_in = x_ref.shape[1]
    z_dim = eps_ref.shape[1]

    x = x_ref[...]
    if use_mask:                       # static branch: no mask HBM stream when dropout==0
        x = x * mask_ref[...]

    # encoder: Linear + ReLU
    h = jnp.dot(x, w_enc_ref[...], preferred_element_type=jnp.float32) + b_enc_ref[...]
    h = jnp.maximum(h, 0.0)

    # fused mu/logvar head: one (H, 2Z) matmul, then lane-slice
    mulv = jnp.dot(h, w_mulv_ref[...], preferred_element_type=jnp.float32) + b_mulv_ref[...]
    mu = mulv[:, :z_dim]
    lv = mulv[:, z_dim:]

    # reparametrize: z = eps * exp(0.5*logvar) + mu
    z = eps_ref[...] * jnp.exp(0.5 * lv) + mu

    # decoder: Linear + ReLU, Linear + Sigmoid
    d1 = jnp.dot(z, w_d1_ref[...], preferred_element_type=jnp.float32) + b_d1_ref[...]
    d1 = jnp.maximum(d1, 0.0)
    logits = jnp.dot(d1, w_d2_ref[...], preferred_element_type=jnp.float32) + b_d2_ref[...]
    recon = jax.nn.sigmoid(logits)

    # single lane-denser output slab: [recon | mu | logvar]
    out_ref[:, :d_in] = recon
    out_ref[:, d_in:d_in + z_dim] = mu
    out_ref[:, d_in + z_dim:] = lv


def vae_forward(x, eps, params, *, dropout_mask=None, batch_tile=None):
    """Fused VAE forward.

    x: (B, D_in) f32; eps: (B, Z) f32; dropout_mask: optional (B, D_in) keep-mask
    (pass None when dropout == 0 — the mask HBM stream is then skipped entirely).
    Returns (recon, mu, logvar).
    """
    (w_enc, b_enc, w_mu, b_mu, w_lv, b_lv, w_d1, b_d1, w_d2, b_d2) = params
    B, D_in = x.shape
    Z = w_mu.shape[1]
    use_mask = dropout_mask is not None

    # Fuse the mu / logvar heads into one weight (done once in the wrapper).
    w_mulv = jnp.concatenate([w_mu, w_lv], axis=1)   # (H, 2Z)
    b_mulv = jnp.concatenate([b_mu, b_lv], axis=1)   # (1, 2Z)

    # Large batch tile (amortizes per-step pipeline overhead); keep >= 2 grid
    # steps when possible so v7x's two TensorCores both get work. Per-row
    # working set is only ~0.5 KB f32, so 8192 rows stays far below scoped VMEM
    # on all of v5e / v6e / v7x even with double-buffering.
    if batch_tile is None:
        half = max(B // 2, 8)
        t = min(8192, pl.next_power_of_2(half))
        if t > half:
            t //= 2
        batch_tile = max(8, t)
    tm = batch_tile

    # Pad batch up to a multiple of the tile (padded rows are zeros; sliced off below).
    Bp = pl.cdiv(B, tm) * tm
    if Bp != B:
        pad = Bp - B
        x = jnp.pad(x, ((0, pad), (0, 0)))
        eps = jnp.pad(eps, ((0, pad), (0, 0)))
        if use_mask:
            dropout_mask = jnp.pad(dropout_mask, ((0, pad), (0, 0)))

    n_out = D_in + 2 * Z
    grid = (Bp // tm,)

    def row_spec(cols):
        return pl.BlockSpec((tm, cols), lambda i: (i, 0))

    def full_spec(shape):
        return pl.BlockSpec(shape, lambda i: (0, 0))

    in_arrays = [x]
    in_specs = [row_spec(D_in)]
    if use_mask:
        in_arrays.append(dropout_mask)
        in_specs.append(row_spec(D_in))
    in_arrays += [eps, w_enc, b_enc, w_mulv, b_mulv, w_d1, b_d1, w_d2, b_d2]
    in_specs += [
        row_spec(Z),
        full_spec(w_enc.shape), full_spec(b_enc.shape),
        full_spec(w_mulv.shape), full_spec(b_mulv.shape),
        full_spec(w_d1.shape), full_spec(b_d1.shape),
        full_spec(w_d2.shape), full_spec(b_d2.shape),
    ]

    out = pl.pallas_call(
        functools.partial(_vae_kernel, use_mask=use_mask),
        out_shape=jax.ShapeDtypeStruct((Bp, n_out), jnp.float32),
        grid_spec=pltpu.PrefetchScalarGridSpec(
            num_scalar_prefetch=0,
            grid=grid,
            in_specs=in_specs,
            out_specs=row_spec(n_out),
        ),
        compiler_params=pltpu.CompilerParams(
            dimension_semantics=("parallel",)),
    )(*in_arrays)

    recon = out[:B, :D_in]
    mu = out[:B, D_in:D_in + Z]
    logvar = out[:B, D_in + Z:]
    return recon, mu, logvar


def init_params(key, input_dim, hidden, latent):
    """Deterministic parameter init (uniform, like torch Linear default)."""
    def linear(k, fan_in, fan_out):
        k1, k2 = jax.random.split(k)
        bound = 1.0 / jnp.sqrt(jnp.float32(fan_in))
        w = jax.random.uniform(k1, (fan_in, fan_out), jnp.float32, -bound, bound)
        b = jax.random.uniform(k2, (1, fan_out), jnp.float32, -bound, bound)
        return w, b

    keys = jax.random.split(key, 5)
    w_enc, b_enc = linear(keys[0], input_dim, hidden)   # encoder_0_linear
    w_mu,  b_mu  = linear(keys[1], hidden, latent)      # mu
    w_lv,  b_lv  = linear(keys[2], hidden, latent)      # logvar
    w_d1,  b_d1  = linear(keys[3], latent, hidden)      # decoder_0_linear
    w_d2,  b_d2  = linear(keys[4], hidden, input_dim)   # decoder_1_linear
    return (w_enc, b_enc, w_mu, b_mu, w_lv, b_lv, w_d1, b_d1, w_d2, b_d2)


def _reference(x, eps, params, mask=None):
    (w_enc, b_enc, w_mu, b_mu, w_lv, b_lv, w_d1, b_d1, w_d2, b_d2) = params
    xm = x if mask is None else x * mask
    h = jnp.maximum(xm @ w_enc + b_enc, 0.0)
    mu = h @ w_mu + b_mu
    lv = h @ w_lv + b_lv
    z = eps * jnp.exp(0.5 * lv) + mu
    d1 = jnp.maximum(z @ w_d1 + b_d1, 0.0)
    recon = jax.nn.sigmoid(d1 @ w_d2 + b_d2)
    return recon, mu, lv


if __name__ == "__main__":
    INPUT_DIM = 32
    HIDDEN = 16
    LATENT = 8
    BATCH = 256          # small test batch -> tile 128, grid=(2,)

    root = jax.random.PRNGKey(0)
    k_param, k_x, k_mask, k_eps = jax.random.split(root, 4)

    params = init_params(k_param, INPUT_DIM, HIDDEN, LATENT)
    x = jax.random.uniform(k_x, (BATCH, INPUT_DIM), jnp.float32)
    eps = jax.random.normal(k_eps, (BATCH, LATENT), jnp.float32)

    # --- case 1: dropout == 0 (no mask HBM stream at all) ---
    recon, mu, logvar = vae_forward(x, eps, params)
    jax.block_until_ready((recon, mu, logvar))
    r_ref, m_ref, l_ref = _reference(x, eps, params)
    assert jnp.allclose(recon, r_ref, atol=1e-5, rtol=1e-5)
    assert jnp.allclose(mu, m_ref, atol=1e-5, rtol=1e-5)
    assert jnp.allclose(logvar, l_ref, atol=1e-5, rtol=1e-5)

    # --- case 2: dropout > 0 (Bernoulli keep-mask, no 1/(1-p) rescale — matches torch code)
    #             also exercises batch padding (B=100 -> tile 32, padded to 128) ---
    B2 = 100
    x2 = x[:B2]
    eps2 = eps[:B2]
    mask2 = jax.random.bernoulli(k_mask, 0.7, (B2, INPUT_DIM)).astype(jnp.float32)
    recon2, mu2, logvar2 = vae_forward(x2, eps2, params, dropout_mask=mask2)
    jax.block_until_ready((recon2, mu2, logvar2))
    r2_ref, m2_ref, l2_ref = _reference(x2, eps2, params, mask2)
    assert jnp.allclose(recon2, r2_ref, atol=1e-5, rtol=1e-5)
    assert jnp.allclose(mu2, m2_ref, atol=1e-5, rtol=1e-5)
    assert jnp.allclose(logvar2, l2_ref, atol=1e-5, rtol=1e-5)

    print("KERNEL_OK")
</pallas_src>

<mosaic_0001>
module attributes {stable_mosaic.version = 11 : i64} {
  func.func @_vae_kernel(%arg0: i32, %arg1: memref<128x32xf32, #tpu.memory_space<vmem>>, %arg2: memref<128x8xf32, #tpu.memory_space<vmem>>, %arg3: memref<32x16xf32, #tpu.memory_space<vmem>>, %arg4: memref<1x16xf32, #tpu.memory_space<vmem>>, %arg5: memref<16x16xf32, #tpu.memory_space<vmem>>, %arg6: memref<1x16xf32, #tpu.memory_space<vmem>>, %arg7: memref<8x16xf32, #tpu.memory_space<vmem>>, %arg8: memref<1x16xf32, #tpu.memory_space<vmem>>, %arg9: memref<16x32xf32, #tpu.memory_space<vmem>>, %arg10: memref<1x32xf32, #tpu.memory_space<vmem>>, %arg11: memref<128x48xf32, #tpu.memory_space<vmem>>) attributes {dimension_semantics = [#tpu.dimension_semantics<parallel>], iteration_bounds = array<i64: 2>, scalar_prefetch = 0 : i64, scratch_operands = 0 : i64, tpu.core_type = #tpu.core_type<tc>, window_params = [{transform_indices = @transform_0, window_bounds = array<i64: 128, 32>}, {transform_indices = @transform_1, window_bounds = array<i64: 128, 8>}, {pipeline_mode = #tpu.pipeline_mode<synchronous>, transform_indices = @transform_2, window_bounds = array<i64: 32, 16>}, {pipeline_mode = #tpu.pipeline_mode<synchronous>, transform_indices = @transform_3, window_bounds = array<i64: 1, 16>}, {pipeline_mode = #tpu.pipeline_mode<synchronous>, transform_indices = @transform_4, window_bounds = array<i64: 16, 16>}, {pipeline_mode = #tpu.pipeline_mode<synchronous>, transform_indices = @transform_5, window_bounds = array<i64: 1, 16>}, {pipeline_mode = #tpu.pipeline_mode<synchronous>, transform_indices = @transform_6, window_bounds = array<i64: 8, 16>}, {pipeline_mode = #tpu.pipeline_mode<synchronous>, transform_indices = @transform_7, window_bounds = array<i64: 1, 16>}, {pipeline_mode = #tpu.pipeline_mode<synchronous>, transform_indices = @transform_8, window_bounds = array<i64: 16, 32>}, {pipeline_mode = #tpu.pipeline_mode<synchronous>, transform_indices = @transform_9, window_bounds = array<i64: 1, 32>}, {transform_indices = @transform_10, window_bounds = array<i64: 128, 48>}]} {
    %c0 = arith.constant 0 : index
    %c0_0 = arith.constant 0 : index
    %0 = vector.load %arg1[%c0, %c0_0] : memref<128x32xf32, #tpu.memory_space<vmem>>, vector<128x32xf32>
    %c0_1 = arith.constant 0 : index
    %c0_2 = arith.constant 0 : index
    %1 = vector.load %arg3[%c0_1, %c0_2] : memref<32x16xf32, #tpu.memory_space<vmem>>, vector<32x16xf32>
    %cst = arith.constant dense<0.000000e+00> : vector<128x16xf32>
    %2 = tpu.matmul %0, %1, %cst {dimension_numbers = #tpu.dot_dimension_numbers<[1], [0], [0], [1], [0, 0, 1, 1], [], []>} : vector<128x32xf32>, vector<32x16xf32>, vector<128x16xf32> -> vector<128x16xf32>
    %c0_3 = arith.constant 0 : index
    %c0_4 = arith.constant 0 : index
    %3 = vector.load %arg4[%c0_3, %c0_4] : memref<1x16xf32, #tpu.memory_space<vmem>>, vector<1x16xf32>
    %4 = vector.broadcast %3 : vector<1x16xf32> to vector<128x16xf32>
    %5 = arith.addf %2, %4 : vector<128x16xf32>
    %cst_5 = arith.constant 0.000000e+00 : f32
    %6 = vector.broadcast %cst_5 : f32 to vector<128x16xf32>
    %7 = arith.maximumf %5, %6 : vector<128x16xf32>
    %c0_6 = arith.constant 0 : index
    %c0_7 = arith.constant 0 : index
    %8 = vector.load %arg5[%c0_6, %c0_7] : memref<16x16xf32, #tpu.memory_space<vmem>>, vector<16x16xf32>
    %cst_8 = arith.constant dense<0.000000e+00> : vector<128x16xf32>
    %9 = tpu.matmul %7, %8, %cst_8 {dimension_numbers = #tpu.dot_dimension_numbers<[1], [0], [0], [1], [0, 0, 1, 1], [], []>} : vector<128x16xf32>, vector<16x16xf32>, vector<128x16xf32> -> vector<128x16xf32>
    %c0_9 = arith.constant 0 : index
    %c0_10 = arith.constant 0 : index
    %10 = vector.load %arg6[%c0_9, %c0_10] : memref<1x16xf32, #tpu.memory_space<vmem>>, vector<1x16xf32>
    %11 = vector.broadcast %10 : vector<1x16xf32> to vector<128x16xf32>
    %12 = arith.addf %9, %11 : vector<128x16xf32>
    %13 = vector.extract_strided_slice %12 {offsets = [0, 0], sizes = [128, 8], strides = [1, 1]} : vector<128x16xf32> to vector<128x8xf32>
    %14 = vector.extract_strided_slice %12 {offsets = [0, 8], sizes = [128, 8], strides = [1, 1]} : vector<128x16xf32> to vector<128x8xf32>
    %c0_11 = arith.constant 0 : index
    %c0_12 = arith.constant 0 : index
    %15 = vector.load %arg2[%c0_11, %c0_12] : memref<128x8xf32, #tpu.memory_space<vmem>>, vector<128x8xf32>
    %cst_13 = arith.constant 5.000000e-01 : f32
    %16 = vector.broadcast %cst_13 : f32 to vector<128x8xf32>
    %17 = arith.mulf %16, %14 : vector<128x8xf32>
    %18 = math.exp %17 : vector<128x8xf32>
    %19 = arith.mulf %15, %18 : vector<128x8xf32>
    %20 = arith.addf %19, %13 : vector<128x8xf32>
    %c0_14 = arith.constant 0 : index
    %c0_15 = arith.constant 0 : index
    %21 = vector.load %arg7[%c0_14, %c0_15] : memref<8x16xf32, #tpu.memory_space<vmem>>, vector<8x16xf32>
    %cst_16 = arith.constant dense<0.000000e+00> : vector<128x16xf32>
    %22 = tpu.matmul %20, %21, %cst_16 {dimension_numbers = #tpu.dot_dimension_numbers<[1], [0], [0], [1], [0, 0, 1, 1], [], []>} : vector<128x8xf32>, vector<8x16xf32>, vector<128x16xf32> -> vector<128x16xf32>
    %c0_17 = arith.constant 0 : index
    %c0_18 = arith.constant 0 : index
    %23 = vector.load %arg8[%c0_17, %c0_18] : memref<1x16xf32, #tpu.memory_space<vmem>>, vector<1x16xf32>
    %24 = vector.broadcast %23 : vector<1x16xf32> to vector<128x16xf32>
    %25 = arith.addf %22, %24 : vector<128x16xf32>
    %cst_19 = arith.constant 0.000000e+00 : f32
    %26 = vector.broadcast %cst_19 : f32 to vector<128x16xf32>
    %27 = arith.maximumf %25, %26 : vector<128x16xf32>
    %c0_20 = arith.constant 0 : index
    %c0_21 = arith.constant 0 : index
    %28 = vector.load %arg9[%c0_20, %c0_21] : memref<16x32xf32, #tpu.memory_space<vmem>>, vector<16x32xf32>
    %cst_22 = arith.constant dense<0.000000e+00> : vector<128x32xf32>
    %29 = tpu.matmul %27, %28, %cst_22 {dimension_numbers = #tpu.dot_dimension_numbers<[1], [0], [0], [1], [0, 0, 1, 1], [], []>} : vector<128x16xf32>, vector<16x32xf32>, vector<128x32xf32> -> vector<128x32xf32>
    %c0_23 = arith.constant 0 : index
    %c0_24 = arith.constant 0 : index
    %30 = vector.load %arg10[%c0_23, %c0_24] : memref<1x32xf32, #tpu.memory_space<vmem>>, vector<1x32xf32>
    %31 = vector.broadcast %30 : vector<1x32xf32> to vector<128x32xf32>
    %32 = arith.addf %29, %31 : vector<128x32xf32>
    %33 = arith.negf %32 : vector<128x32xf32>
    %34 = math.exp %33 : vector<128x32xf32>
    %cst_25 = arith.constant 1.000000e+00 : f32
    %35 = vector.broadcast %cst_25 : f32 to vector<128x32xf32>
    %36 = arith.addf %35, %34 : vector<128x32xf32>
    %37 = arith.divf %35, %36 : vector<128x32xf32>
    %c0_26 = arith.constant 0 : index
    %c0_27 = arith.constant 0 : index
    %38 = vector.load %arg11[%c0_26, %c0_27] : memref<128x48xf32, #tpu.memory_space<vmem>>, vector<128x32xf32>
    tpu.vector_store %arg11[%c0_26, %c0_27], %37 {strides = array<i32>} : memref<128x48xf32, #tpu.memory_space<vmem>>, vector<128x32xf32>,
    %c0_28 = arith.constant 0 : index
    %c32 = arith.constant 32 : index
    %39 = vector.load %arg11[%c0_28, %c32] : memref<128x48xf32, #tpu.memory_space<vmem>>, vector<128x8xf32>
    tpu.vector_store %arg11[%c0_28, %c32], %13 {strides = array<i32>} : memref<128x48xf32, #tpu.memory_space<vmem>>, vector<128x8xf32>,
    %c0_29 = arith.constant 0 : index
    %c40 = arith.constant 40 : index
    %40 = vector.load %arg11[%c0_29, %c40] : memref<128x48xf32, #tpu.memory_space<vmem>>, vector<128x8xf32>
    tpu.vector_store %arg11[%c0_29, %c40], %14 {strides = array<i32>} : memref<128x48xf32, #tpu.memory_space<vmem>>, vector<128x8xf32>,
    return
  }
  func.func @transform_0(%arg0: i32) -> (i32, i32) {
    %c0_i32 = arith.constant 0 : i32
    %c0_i32_0 = arith.constant 0 : i32
    return %arg0, %c0_i32 : i32, i32
  }
  func.func @transform_1(%arg0: i32) -> (i32, i32) {
    %c0_i32 = arith.constant 0 : i32
    %c0_i32_0 = arith.constant 0 : i32
    return %arg0, %c0_i32 : i32, i32
  }
  func.func @transform_2(%arg0: i32) -> (i32, i32) {
    %c0_i32 = arith.constant 0 : i32
    %c0_i32_0 = arith.constant 0 : i32
    %c0_i32_1 = arith.constant 0 : i32
    return %c0_i32, %c0_i32_0 : i32, i32
  }
  func.func @transform_3(%arg0: i32) -> (i32, i32) {
    %c0_i32 = arith.constant 0 : i32
    %c0_i32_0 = arith.constant 0 : i32
    %c0_i32_1 = arith.constant 0 : i32
    return %c0_i32, %c0_i32_0 : i32, i32
  }
  func.func @transform_4(%arg0: i32) -> (i32, i32) {
    %c0_i32 = arith.constant 0 : i32
    %c0_i32_0 = arith.constant 0 : i32
    %c0_i32_1 = arith.constant 0 : i32
    return %c0_i32, %c0_i32_0 : i32, i32
  }
  func.func @transform_5(%arg0: i32) -> (i32, i32) {
    %c0_i32 = arith.constant 0 : i32
    %c0_i32_0 = arith.constant 0 : i32
    %c0_i32_1 = arith.constant 0 : i32
    return %c0_i32, %c0_i32_0 : i32, i32
  }
  func.func @transform_6(%arg0: i32) -> (i32, i32) {
    %c0_i32 = arith.constant 0 : i32
    %c0_i32_0 = arith.constant 0 : i32
    %c0_i32_1 = arith.constant 0 : i32
    return %c0_i32, %c0_i32_0 : i32, i32
  }
  func.func @transform_7(%arg0: i32) -> (i32, i32) {
    %c0_i32 = arith.constant 0 : i32
    %c0_i32_0 = arith.constant 0 : i32
    %c0_i32_1 = arith.constant 0 : i32
    return %c0_i32, %c0_i32_0 : i32, i32
  }
  func.func @transform_8(%arg0: i32) -> (i32, i32) {
    %c0_i32 = arith.constant 0 : i32
    %c0_i32_0 = arith.constant 0 : i32
    %c0_i32_1 = arith.constant 0 : i32
    return %c0_i32, %c0_i32_0 : i32, i32
  }
  func.func @transform_9(%arg0: i32) -> (i32, i32) {
    %c0_i32 = arith.constant 0 : i32
    %c0_i32_0 = arith.constant 0 : i32
    %c0_i32_1 = arith.constant 0 : i32
    return %c0_i32, %c0_i32_0 : i32, i32
  }
  func.func @transform_10(%arg0: i32) -> (i32, i32) {
    %c0_i32 = arith.constant 0 : i32
    %c0_i32_0 = arith.constant 0 : i32
    return %arg0, %c0_i32 : i32, i32
  }
}

</mosaic_0001>

<llo_original>
// kernel: tpu_custom_call.1
$region0: #{tpu_custom_call.1}
  #allocation0 [shape = 'u32[]', space=smem, size = 0x4, offset = 0x4, fixed_abs, tag = 'smem constant byte address 0x4 - core index']
  #allocation1 [shape = 'u32[72,128]{1,0:T(1,128)}', space=vmem, size = 0x9000, scoped, tag = 'internal scratch']
  %s0 = inlined_call_operand.vmem [shape: f32[256,32], index: 0, kind: input, shape index: {}]
  %s1 = inlined_call_operand.vmem [shape: f32[256,8], index: 1, kind: input, shape index: {}]
  %s2 = inlined_call_operand.vmem [shape: f32[32,16], index: 2, kind: input, shape index: {}]
  %s3 = inlined_call_operand.vmem [shape: f32[1,16], index: 3, kind: input, shape index: {}]
  %s4 = inlined_call_operand.vmem [shape: f32[16,16], index: 4, kind: input, shape index: {}]
  %s5 = inlined_call_operand.vmem [shape: f32[1,16], index: 5, kind: input, shape index: {}]
  %s6 = inlined_call_operand.vmem [shape: f32[8,16], index: 6, kind: input, shape index: {}]
  %s7 = inlined_call_operand.vmem [shape: f32[1,16], index: 7, kind: input, shape index: {}]
  %s8 = inlined_call_operand.vmem [shape: f32[16,32], index: 8, kind: input, shape index: {}]
  %s9 = inlined_call_operand.vmem [shape: f32[1,32], index: 9, kind: input, shape index: {}]
  %s10 = inlined_call_operand.vmem [shape: f32[256,48], index: 10, kind: output, shape index: {}]
  %s11 = sld [smem:[#allocation0]]
  $region73: #{tpu_custom_call.1} parent=0
    _
  %s13 = ssub.s32 1, %s11
  %s14 = scalar_select 0, %s13, %s11
  loop: start=0, step=1, limit=4
  $region2: #{tpu_custom_call.1} parent=0 // loop_pre_header
    _
  $region3: #{tpu_custom_call.1} parent=0 // loop_header
    %s16 = sphi 0, %s20
    %p17 = scmp.ge.s32.totalorder %s16, 4
    %s26 = sphi 0, %s28
    %s29 = sphi 0, %s26
    %s30 = sphi 0, %s29
    %s46 = sphi 0, %s30
    %s52 = sphi 0, %s54
    %s55 = sphi 0, %s52
    %s56 = sphi 0, %s55
    %s72 = sphi 0, %s56
    %s76 = sphi 0, %s76
    %s78 = sphi 0, %s76
    %s79 = sphi 0, %s78
    %s93 = sphi 0, %s79
    %s97 = sphi 0, %s97
    %s99 = sphi 0, %s97
    %s100 = sphi 0, %s99
    %s114 = sphi 0, %s100
    %s118 = sphi 0, %s118
    %s120 = sphi 0, %s118
    %s121 = sphi 0, %s120
    %s135 = sphi 0, %s121
    %s139 = sphi 0, %s139
    %s141 = sphi 0, %s139
    %s142 = sphi 0, %s141
    %s156 = sphi 0, %s142
    %s160 = sphi 0, %s160
    %s162 = sphi 0, %s160
    %s163 = sphi 0, %s162
    %s177 = sphi 0, %s163
    %s181 = sphi 0, %s181
    %s183 = sphi 0, %s181
    %s184 = sphi 0, %s183
    %s198 = sphi 0, %s184
    %s202 = sphi 0, %s202
    %s204 = sphi 0, %s202
    %s205 = sphi 0, %s204
    %s219 = sphi 0, %s205
    %s223 = sphi 0, %s223
    %s225 = sphi 0, %s223
    %s226 = sphi 0, %s225
    %s240 = sphi 0, %s226
    %s246 = sphi 0, %s248
    %s249 = sphi 0, %s246
    %s250 = sphi 0, %s249
    %s266 = sphi 0, %s250
  $region4: #{tpu_custom_call.1} parent=0 // loop_header_branch
    %19 = sbr.rel (%p17) target = $region8
  $region5: #{tpu_custom_call.1} parent=0 // loop_body
    %s21 = ssub.s32 %s16, 1
    %s22 = ssub.s32 %s16, 2
    %s23 = sadd.s32 %s16, 1
    %s24 = ssub.s32 %s16, %s23
    %p25 = scmp.eq.s32.totalorder %s24, 0
    %s27 = sadd.s32 %s26, 1
    %s28 = scalar_select %p25, %s26, %s27
    %p31 = pneg %p25
    %p32 = scmp.eq.s32.totalorder %s16, 1
    %p33 = por %p31, %p32
    %p34 = scmp.ne.s32.totalorder %s26, %s29
    %p35 = scmp.eq.s32.totalorder %s16, 0
    %p36 = por %p34, %p35
    %p37 = scmp.ne.s32.totalorder %s26, %s29
    %p38 = scmp.eq.s32.totalorder %s21, 1
    %p39 = por %p37, %p38
    %p40 = scmp.ne.s32.totalorder %s29, %s30
    %p41 = scmp.eq.s32.totalorder %s21, 0
    %p42 = por %p40, %p41
    %p43 = scmp.ne.s32.totalorder %s29, %s30
    %p44 = scmp.eq.s32.totalorder %s22, 1
    %p45 = por %p43, %p44
    %p47 = scmp.ne.s32.totalorder %s30, %s46
    %p48 = scmp.eq.s32.totalorder %s22, 0
    %p49 = por %p47, %p48
    %s50 = ssub.s32 %s16, %s23
    %p51 = scmp.eq.s32.totalorder %s50, 0
    %s53 = sadd.s32 %s52, 1
    %s54 = scalar_select %p51, %s52, %s53
    %p57 = pneg %p51
    %p58 = scmp.eq.s32.totalorder %s16, 1
    %p59 = por %p57, %p58
    %p60 = scmp.ne.s32.totalorder %s52, %s55
    %p61 = scmp.eq.s32.totalorder %s16, 0
    %p62 = por %p60, %p61
    %p63 = scmp.ne.s32.totalorder %s52, %s55
    %p64 = scmp.eq.s32.totalorder %s21, 1
    %p65 = por %p63, %p64
    %p66 = scmp.ne.s32.totalorder %s55, %s56
    %p67 = scmp.eq.s32.totalorder %s21, 0
    %p68 = por %p66, %p67
    %p69 = scmp.ne.s32.totalorder %s55, %s56
    %p70 = scmp.eq.s32.totalorder %s22, 1
    %p71 = por %p69, %p70
    %p73 = scmp.ne.s32.totalorder %s56, %s72
    %p74 = scmp.eq.s32.totalorder %s22, 0
    %p75 = por %p73, %p74
    %s77 = sadd.s32 %s76, 1
    %p80 = scmp.eq.s32.totalorder %s16, 1
    %p81 = scmp.ne.s32.totalorder %s76, %s78
    %p82 = scmp.eq.s32.totalorder %s16, 0
    %p83 = por %p81, %p82
    %p84 = scmp.ne.s32.totalorder %s76, %s78
    %p85 = scmp.eq.s32.totalorder %s21, 1
    %p86 = por %p84, %p85
    %p87 = scmp.ne.s32.totalorder %s78, %s79
    %p88 = scmp.eq.s32.totalorder %s21, 0
    %p89 = por %p87, %p88
    %p90 = scmp.ne.s32.totalorder %s78, %s79
    %p91 = scmp.eq.s32.totalorder %s22, 1
    %p92 = por %p90, %p91
    %p94 = scmp.ne.s32.totalorder %s79, %s93
    %p95 = scmp.eq.s32.totalorder %s22, 0
    %p96 = por %p94, %p95
    %s98 = sadd.s32 %s97, 1
    %p101 = scmp.eq.s32.totalorder %s16, 1
    %p102 = scmp.ne.s32.totalorder %s97, %s99
    %p103 = scmp.eq.s32.totalorder %s16, 0
    %p104 = por %p102, %p103
    %p105 = scmp.ne.s32.totalorder %s97, %s99
    %p106 = scmp.eq.s32.totalorder %s21, 1
    %p107 = por %p105, %p106
    %p108 = scmp.ne.s32.totalorder %s99, %s100
    %p109 = scmp.eq.s32.totalorder %s21, 0
    %p110 = por %p108, %p109
    %p111 = scmp.ne.s32.totalorder %s99, %s100
    %p112 = scmp.eq.s32.totalorder %s22, 1
    %p113 = por %p111, %p112
    %p115 = scmp.ne.s32.totalorder %s100, %s114
    %p116 = scmp.eq.s32.totalorder %s22, 0
    %p117 = por %p115, %p116
    %s119 = sadd.s32 %s118, 1
    %p122 = scmp.eq.s32.totalorder %s16, 1
    %p123 = scmp.ne.s32.totalorder %s118, %s120
    %p124 = scmp.eq.s32.totalorder %s16, 0
    %p125 = por %p123, %p124
    %p126 = scmp.ne.s32.totalorder %s118, %s120
    %p127 = scmp.eq.s32.totalorder %s21, 1
    %p128 = por %p126, %p127
    %p129 = scmp.ne.s32.totalorder %s120, %s121
    %p130 = scmp.eq.s32.totalorder %s21, 0
    %p131 = por %p129, %p130
    %p132 = scmp.ne.s32.totalorder %s120, %s121
    %p133 = scmp.eq.s32.totalorder %s22, 1
    %p134 = por %p132, %p133
    %p136 = scmp.ne.s32.totalorder %s121, %s135
    %p137 = scmp.eq.s32.totalorder %s22, 0
    %p138 = por %p136, %p137
    %s140 = sadd.s32 %s139, 1
    %p143 = scmp.eq.s32.totalorder %s16, 1
    %p144 = scmp.ne.s32.totalorder %s139, %s141
    %p145 = scmp.eq.s32.totalorder %s16, 0
    %p146 = por %p144, %p145
    %p147 = scmp.ne.s32.totalorder %s139, %s141
    %p148 = scmp.eq.s32.totalorder %s21, 1
    %p149 = por %p147, %p148
    %p150 = scmp.ne.s32.totalorder %s141, %s142
    %p151 = scmp.eq.s32.totalorder %s21, 0
    %p152 = por %p150, %p151
    %p153 = scmp.ne.s32.totalorder %s141, %s142
    %p154 = scmp.eq.s32.totalorder %s22, 1
    %p155 = por %p153, %p154
    %p157 = scmp.ne.s32.totalorder %s142, %s156
    %p158 = scmp.eq.s32.totalorder %s22, 0
    %p159 = por %p157, %p158
    %s161 = sadd.s32 %s160, 1
    %p164 = scmp.eq.s32.totalorder %s16, 1
    %p165 = scmp.ne.s32.totalorder %s160, %s162
    %p166 = scmp.eq.s32.totalorder %s16, 0
    %p167 = por %p165, %p166
    %p168 = scmp.ne.s32.totalorder %s160, %s162
    %p169 = scmp.eq.s32.totalorder %s21, 1
    %p170 = por %p168, %p169
    %p171 = scmp.ne.s32.totalorder %s162, %s163
    %p172 = scmp.eq.s32.totalorder %s21, 0
    %p173 = por %p171, %p172
    %p174 = scmp.ne.s32.totalorder %s162, %s163
    %p175 = scmp.eq.s32.totalorder %s22, 1
    %p176 = por %p174, %p175
    %p178 = scmp.ne.s32.totalorder %s163, %s177
    %p179 = scmp.eq.s32.totalorder %s22, 0
    %p180 = por %p178, %p179
    %s182 = sadd.s32 %s181, 1
    %p185 = scmp.eq.s32.totalorder %s16, 1
    %p186 = scmp.ne.s32.totalorder %s181, %s183
    %p187 = scmp.eq.s32.totalorder %s16, 0
    %p188 = por %p186, %p187
    %p189 = scmp.ne.s32.totalorder %s181, %s183
    %p190 = scmp.eq.s32.totalorder %s21, 1
    %p191 = por %p189, %p190
    %p192 = scmp.ne.s32.totalorder %s183, %s184
    %p193 = scmp.eq.s32.totalorder %s21, 0
    %p194 = por %p192, %p193
    %p195 = scmp.ne.s32.totalorder %s183, %s184
    %p196 = scmp.eq.s32.totalorder %s22, 1
    %p197 = por %p195, %p196
    %p199 = scmp.ne.s32.totalorder %s184, %s198
    %p200 = scmp.eq.s32.totalorder %s22, 0
    %p201 = por %p199, %p200
    %s203 = sadd.s32 %s202, 1
    %p206 = scmp.eq.s32.totalorder %s16, 1
    %p207 = scmp.ne.s32.totalorder %s202, %s204
    %p208 = scmp.eq.s32.totalorder %s16, 0
    %p209 = por %p207, %p208
    %p210 = scmp.ne.s32.totalorder %s202, %s204
    %p211 = scmp.eq.s32.totalorder %s21, 1
    %p212 = por %p210, %p211
    %p213 = scmp.ne.s32.totalorder %s204, %s205
    %p214 = scmp.eq.s32.totalorder %s21, 0
    %p215 = por %p213, %p214
    %p216 = scmp.ne.s32.totalorder %s204, %s205
    %p217 = scmp.eq.s32.totalorder %s22, 1
    %p218 = por %p216, %p217
    %p220 = scmp.ne.s32.totalorder %s205, %s219
    %p221 = scmp.eq.s32.totalorder %s22, 0
    %p222 = por %p220, %p221
    %s224 = sadd.s32 %s223, 1
    %p227 = scmp.eq.s32.totalorder %s16, 1
    %p228 = scmp.ne.s32.totalorder %s223, %s225
    %p229 = scmp.eq.s32.totalorder %s16, 0
    %p230 = por %p228, %p229
    %p231 = scmp.ne.s32.totalorder %s223, %s225
    %p232 = scmp.eq.s32.totalorder %s21, 1
    %p233 = por %p231, %p232
    %p234 = scmp.ne.s32.totalorder %s225, %s226
    %p235 = scmp.eq.s32.totalorder %s21, 0
    %p236 = por %p234, %p235
    %p237 = scmp.ne.s32.totalorder %s225, %s226
    %p238 = scmp.eq.s32.totalorder %s22, 1
    %p239 = por %p237, %p238
    %p241 = scmp.ne.s32.totalorder %s226, %s240
    %p242 = scmp.eq.s32.totalorder %s22, 0
    %p243 = por %p241, %p242
    %s244 = ssub.s32 %s16, %s23
    %p245 = scmp.eq.s32.totalorder %s244, 0
    %s247 = sadd.s32 %s246, 1
    %s248 = scalar_select %p245, %s246, %s247
    %p251 = pneg %p245
    %p252 = scmp.eq.s32.totalorder %s16, 1
    %p253 = por %p251, %p252
    %p254 = scmp.ne.s32.totalorder %s246, %s249
    %p255 = scmp.eq.s32.totalorder %s16, 0
    %p256 = por %p254, %p255
    %p257 = scmp.ne.s32.totalorder %s246, %s249
    %p258 = scmp.eq.s32.totalorder %s21, 1
    %p259 = por %p257, %p258
    %p260 = scmp.ne.s32.totalorder %s249, %s250
    %p261 = scmp.eq.s32.totalorder %s21, 0
    %p262 = por %p260, %p261
    %p263 = scmp.ne.s32.totalorder %s249, %s250
    %p264 = scmp.eq.s32.totalorder %s22, 1
    %p265 = por %p263, %p264
    %p267 = scmp.ne.s32.totalorder %s250, %s266
    %p268 = scmp.eq.s32.totalorder %s22, 0
    %p269 = por %p267, %p268
    %p270 = scmp.le.s32.totalorder 1, %s16
    %p271 = scmp.lt.s32.totalorder %s16, 3
    %p272 = pnand %p270, %p271
    %p273 = pneg %p272
    // Predicated region
    $region9: #{tpu_custom_call.1} parent=5 // pred_check
      _
    $region10: #{tpu_custom_call.1} parent=5 // pred_check_branch
      %275 = sbr.rel (%p272) target = $region12
    $region11: #{tpu_custom_call.1} parent=5 // pred_region
      %s276 = ssub.s32 %s16, 1
      // Predicated region
      $region13: #{tpu_custom_call.1} parent=11 // pred_check
        %p277 = pneg %p89
      $region14: #{tpu_custom_call.1} parent=11 // pred_check_branch
        %279 = sbr.rel (%p277) target = $region16
      $region15: #{tpu_custom_call.1} parent=11 // pred_region
        _
      $region16: #{tpu_custom_call.1} parent=11 // pred_fallthru
        _
      // Predicated region
      $region17: #{tpu_custom_call.1} parent=11 // pred_check
        %p280 = pneg %p110
      $region18: #{tpu_custom_call.1} parent=11 // pred_check_branch
        %282 = sbr.rel (%p280) target = $region20
      $region19: #{tpu_custom_call.1} parent=11 // pred_region
        _
      $region20: #{tpu_custom_call.1} parent=11 // pred_fallthru
        _
      // Predicated region
      $region21: #{tpu_custom_call.1} parent=11 // pred_check
        %p283 = pneg %p131
      $region22: #{tpu_custom_call.1} parent=11 // pred_check_branch
        %285 = sbr.rel (%p283) target = $region24
      $region23: #{tpu_custom_call.1} parent=11 // pred_region
        _
      $region24: #{tpu_custom_call.1} parent=11 // pred_fallthru
        _
      // Predicated region
      $region25: #{tpu_custom_call.1} parent=11 // pred_check
        %p286 = pneg %p152
      $region26: #{tpu_custom_call.1} parent=11 // pred_check_branch
        %288 = sbr.rel (%p286) target = $region28
      $region27: #{tpu_custom_call.1} parent=11 // pred_region
        _
      $region28: #{tpu_custom_call.1} parent=11 // pred_fallthru
        _
      // Predicated region
      $region29: #{tpu_custom_call.1} parent=11 // pred_check
        %p289 = pneg %p173
      $region30: #{tpu_custom_call.1} parent=11 // pred_check_branch
        %291 = sbr.rel (%p289) target = $region32
      $region31: #{tpu_custom_call.1} parent=11 // pred_region
        _
      $region32: #{tpu_custom_call.1} parent=11 // pred_fallthru
        _
      // Predicated region
      $region33: #{tpu_custom_call.1} parent=11 // pred_check
        %p292 = pneg %p194
      $region34: #{tpu_custom_call.1} parent=11 // pred_check_branch
        %294 = sbr.rel (%p292) target = $region36
      $region35: #{tpu_custom_call.1} parent=11 // pred_region
        _
      $region36: #{tpu_custom_call.1} parent=11 // pred_fallthru
        _
      // Predicated region
      $region37: #{tpu_custom_call.1} parent=11 // pred_check
        %p295 = pneg %p215
      $region38: #{tpu_custom_call.1} parent=11 // pred_check_branch
        %297 = sbr.rel (%p295) target = $region40
      $region39: #{tpu_custom_call.1} parent=11 // pred_region
        _
      $region40: #{tpu_custom_call.1} parent=11 // pred_fallthru
        _
      // Predicated region
      $region41: #{tpu_custom_call.1} parent=11 // pred_check
        %p298 = pneg %p236
      $region42: #{tpu_custom_call.1} parent=11 // pred_check_branch
        %300 = sbr.rel (%p298) target = $region44
      $region43: #{tpu_custom_call.1} parent=11 // pred_region
        _
      $region44: #{tpu_custom_call.1} parent=11 // pred_fallthru
        _
    $region12: #{tpu_custom_call.1} parent=5 // pred_fallthru
      _
    %p301 = scmp.lt.s32.totalorder %s16, 2
    // Predicated region
    $region45: #{tpu_custom_call.1} parent=5 // pred_check
      %p302 = pneg %p301
    $region46: #{tpu_custom_call.1} parent=5 // pred_check_branch
      %304 = sbr.rel (%p302) target = $region48
    $region47: #{tpu_custom_call.1} parent=5 // pred_region
      // Predicated region
      $region49: #{tpu_custom_call.1} parent=47 // pred_check
        %p305 = pneg %p36
      $region50: #{tpu_custom_call.1} parent=47 // pred_check_branch
        %307 = sbr.rel (%p305) target = $region52
      $region51: #{tpu_custom_call.1} parent=47 // pred_region
        %s308 = smul.u32 16, %s16
        %p309 = scmp.lt.s32.totalorder %s308, 31
        %s310 = scalar_select %p309, %s308, 31
        %s311 = smul.addr %s310, 8
        %s312 = scalar_lea.vmem %s0, %s311
        %s313 = smul.u32 16, %s16
      $region52: #{tpu_custom_call.1} parent=47 // pred_fallthru
        _
      // Predicated region
      $region53: #{tpu_custom_call.1} parent=47 // pred_check
        %p314 = pneg %p62
      $region54: #{tpu_custom_call.1} parent=47 // pred_check_branch
        %316 = sbr.rel (%p314) target = $region56
      $region55: #{tpu_custom_call.1} parent=47 // pred_region
        %s317 = smul.u32 16, %s16
        %p318 = scmp.lt.s32.totalorder %s317, 31
        %s319 = scalar_select %p318, %s317, 31
        %s320 = smul.addr %s319, 8
        %s321 = scalar_lea.vmem %s1, %s320
        %s322 = smul.u32 16, %s16
      $region56: #{tpu_custom_call.1} parent=47 // pred_fallthru
        _
    $region48: #{tpu_custom_call.1} parent=5 // pred_fallthru
      _
    %p323 = scmp.le.s32.totalorder 1, %s16
    %p324 = scmp.lt.s32.totalorder %s16, 3
    %p325 = pnand %p323, %p324
    %p326 = pneg %p325
    // Predicated region
    $region57: #{tpu_custom_call.1} parent=5 // pred_check
      _
    $region58: #{tpu_custom_call.1} parent=5 // pred_check_branch
      %328 = sbr.rel (%p325) target = $region60
    $region59: #{tpu_custom_call.1} parent=5 // pred_region
      %s329 = ssub.s32 %s16, 1
      %s330 = smul.u32 16, %s21
      %p331 = scmp.lt.s32.totalorder %s330, 31
      %s332 = scalar_select %p331, %s330, 31
      %s333 = smul.addr %s332, 8
      %s334 = scalar_lea.vmem %s0, %s333
      %p335 = pneg %p42
      %p336 = pneg %p39
      %s337 = smul.u32 16, %s21
      %p338 = scmp.lt.s32.totalorder %s337, 31
      %s339 = scalar_select %p338, %s337, 31
      %s340 = smul.addr %s339, 8
      %s341 = scalar_lea.vmem %s1, %s340
      %p342 = pneg %p68
      %p343 = pneg %p65
      %p344 = pneg %p89
      %p345 = pneg %p86
      %p346 = pneg %p110
      %p347 = pneg %p107
      %p348 = pneg %p131
      %p349 = pneg %p128
      %p350 = pneg %p152
      %p351 = pneg %p149
      %p352 = pneg %p173
      %p353 = pneg %p170
      %p354 = pneg %p194
      %p355 = pneg %p191
      %p356 = pneg %p215
      %p357 = pneg %p212
      %p358 = pneg %p236
      %p359 = pneg %p233
      %p360 = pneg %p262
      %p361 = pneg %p259
      %s362 = smul.u32 16, %s21
      %p363 = scmp.lt.s32.totalorder %s362, 31
      %s364 = scalar_select %p363, %s362, 31
      %s365 = smul.addr %s364, 8
      %s366 = scalar_lea.vmem %s10, %s365
      %s367 = smul.u32 16, %s21
      %p368 = scmp.lt.s32.totalorder %s367, 31
      %s369 = scalar_select %p368, %s367, 31
      %s370 = smul.addr %s369, 8
      %s371 = scalar_lea.vmem %s0, %s370
      %s372 = smul.u32 16, %s21
      %s373 = smul.u32 16, %s21
      %p374 = scmp.lt.s32.totalorder %s373, 31
      %s375 = scalar_select %p374, %s373, 31
      %s376 = smul.addr %s375, 8
      %s377 = scalar_lea.vmem %s1, %s376
      %s378 = smul.u32 16, %s21
      %s379 = smul.u32 16, %s21
      %p380 = scmp.lt.s32.totalorder %s379, 31
      %s381 = scalar_select %p380, %s379, 31
      %s382 = smul.addr %s381, 8
      %s383 = scalar_lea.vmem %s10, %s382
      %s384 = smul.u32 16, %s21
      %v385 = vld [vmem:[%s371] sm:$0xff]
      %v386 = vld [vmem:[%s371 + $0x8] sm:$0xff]
      %v387 = vld [vmem:[%s371 + $0x10] sm:$0xff]
      %v388 = vld [vmem:[%s371 + $0x18] sm:$0xff]
      %v389 = vld [vmem:[%s371 + $0x20] sm:$0xff]
      %v390 = vld [vmem:[%s371 + $0x28] sm:$0xff]
      %v391 = vld [vmem:[%s371 + $0x30] sm:$0xff]
      %v392 = vld [vmem:[%s371 + $0x38] sm:$0xff]
      %v393 = vld [vmem:[%s371 + $0x40] sm:$0xff]
      %v394 = vld [vmem:[%s371 + $0x48] sm:$0xff]
      %v395 = vld [vmem:[%s371 + $0x50] sm:$0xff]
      %v396 = vld [vmem:[%s371 + $0x58] sm:$0xff]
      %v397 = vld [vmem:[%s371 + $0x60] sm:$0xff]
      %v398 = vld [vmem:[%s371 + $0x68] sm:$0xff]
      %v399 = vld [vmem:[%s371 + $0x70] sm:$0xff]
      %v400 = vld [vmem:[%s371 + $0x78] sm:$0xff]
      %v401 = vld [vmem:[%s2] sm:$0xff]
      %v402 = vld [vmem:[%s2 + $0x8] sm:$0xff]
      %v403 = vld [vmem:[%s2 + $0x10] sm:$0xff]
      %v404 = vld [vmem:[%s2 + $0x18] sm:$0xff]
      %v405 = vld [vmem:[%s3] sm:$0x1]
      %v407 = vperm.slane %v405, 0
      %vm409 = vcmask 261120
      %v411 = vsel %vm409, %v385, 0
      %v414 = vsel %vm409, %v386, 0
      %v417 = vsel %vm409, %v387, 0
      %v420 = vsel %vm409, %v388, 0
      %v423 = vsel %vm409, %v389, 0
      %v426 = vsel %vm409, %v390, 0
      %v429 = vsel %vm409, %v391, 0
      %v432 = vsel %vm409, %v392, 0
      %v435 = vsel %vm409, %v393, 0
      %v438 = vsel %vm409, %v394, 0
      %v441 = vsel %vm409, %v395, 0
      %v444 = vsel %vm409, %v396, 0
      %v447 = vsel %vm409, %v397, 0
      %v450 = vsel %vm409, %v398, 0
      %v453 = vsel %vm409, %v399, 0
      %v456 = vsel %vm409, %v400, 0
      %458 = vmatpush.msra.mxu0 0.0
      %459 = vmatpush.msra.mxu0 0.0
      %460 = vmatpush.msra.mxu0 0.0
      %461 = vmatpush.msra.mxu0 0.0
      %462 = vmatpush.msra.mxu0 0.0
      %463 = vmatpush.msra.mxu0 0.0
      %464 = vmatpush.msra.mxu0 0.0
      %465 = vmatpush.msra.mxu0 0.0
      %466 = vmatpush.msra.mxu0 0.0
      %467 = vmatpush.msra.mxu0 0.0
      %468 = vmatpush.msra.mxu0 0.0
      %469 = vmatpush.msra.mxu0 0.0
      %470 = vmatpush.msra.mxu0 %v404
      %471 = vmatpush.msra.mxu0 %v403
      %472 = vmatpush.msra.mxu0 %v402
      %473 = vmatpush.msra.mxu0 %v401
      %474 = vmatmul.f32.gmra.mxu0 %v411
      %v475 = vpop.f32.mrf.mxu0
      %v476 = vadd.f32 %v407, %v475
      %477 = vmatmul.f32.gmra.mxu0 %v414
      %v478 = vpop.f32.mrf.mxu0
      %v479 = vadd.f32 %v407, %v478
      %480 = vmatmul.f32.gmra.mxu0 %v417
      %v481 = vpop.f32.mrf.mxu0
      %v482 = vadd.f32 %v407, %v481
      %483 = vmatmul.f32.gmra.mxu0 %v420
      %v484 = vpop.f32.mrf.mxu0
      %v485 = vadd.f32 %v407, %v484
      %486 = vmatmul.f32.gmra.mxu0 %v423
      %v487 = vpop.f32.mrf.mxu0
      %v488 = vadd.f32 %v407, %v487
      %489 = vmatmul.f32.gmra.mxu0 %v426
      %v490 = vpop.f32.mrf.mxu0
      %v491 = vadd.f32 %v407, %v490
      %492 = vmatmul.f32.gmra.mxu0 %v429
      %v493 = vpop.f32.mrf.mxu0
      %v494 = vadd.f32 %v407, %v493
      %495 = vmatmul.f32.gmra.mxu0 %v432
      %v496 = vpop.f32.mrf.mxu0
      %v497 = vadd.f32 %v407, %v496
      %498 = vmatmul.f32.gmra.mxu0 %v435
      %v499 = vpop.f32.mrf.mxu0
      %v500 = vadd.f32 %v407, %v499
      %501 = vmatmul.f32.gmra.mxu0 %v438
      %v502 = vpop.f32.mrf.mxu0
      %v503 = vadd.f32 %v407, %v502
      %504 = vmatmul.f32.gmra.mxu0 %v441
      %v505 = vpop.f32.mrf.mxu0
      %v506 = vadd.f32 %v407, %v505
      %507 = vmatmul.f32.gmra.mxu0 %v444
      %v508 = vpop.f32.mrf.mxu0
      %v509 = vadd.f32 %v407, %v508
      %510 = vmatmul.f32.gmra.mxu0 %v447
      %v511 = vpop.f32.mrf.mxu0
      %v512 = vadd.f32 %v407, %v511
      %513 = vmatmul.f32.gmra.mxu0 %v450
      %v514 = vpop.f32.mrf.mxu0
      %v515 = vadd.f32 %v407, %v514
      %516 = vmatmul.f32.gmra.mxu0 %v453
      %v517 = vpop.f32.mrf.mxu0
      %v518 = vadd.f32 %v407, %v517
      %519 = vmatmul.f32.gmra.mxu0 %v456
      %v520 = vpop.f32.mrf.mxu0
      %v521 = vadd.f32 %v407, %v520
      %522 = vdwg.mxu0
      %v523 = vmax.f32 %v476, 0.0
      %v524 = vmax.f32 %v479, 0.0
      %v525 = vmax.f32 %v482, 0.0
      %v526 = vmax.f32 %v485, 0.0
      %v527 = vmax.f32 %v488, 0.0
      %v528 = vmax.f32 %v491, 0.0
      %v529 = vmax.f32 %v494, 0.0
      %v530 = vmax.f32 %v497, 0.0
      %v531 = vmax.f32 %v500, 0.0
      %v532 = vmax.f32 %v503, 0.0
      %v533 = vmax.f32 %v506, 0.0
      %v534 = vmax.f32 %v509, 0.0
      %v535 = vmax.f32 %v512, 0.0
      %v536 = vmax.f32 %v515, 0.0
      %v537 = vmax.f32 %v518, 0.0
      %v538 = vmax.f32 %v521, 0.0
      %v539 = vld [vmem:[%s4] sm:$0xff]
      %v540 = vld [vmem:[%s4 + $0x8] sm:$0xff]
      %v541 = vld [vmem:[%s5] sm:$0x1]
      %v543 = vperm.slane %v541, 0
      %vm545 = vcmask 130048
      %v547 = vsel %vm545, %v523, 0
      %v550 = vsel %vm545, %v524, 0
      %v553 = vsel %vm545, %v525, 0
      %v556 = vsel %vm545, %v526, 0
      %v559 = vsel %vm545, %v527, 0
      %v562 = vsel %vm545, %v528, 0
      %v565 = vsel %vm545, %v529, 0
      %v568 = vsel %vm545, %v530, 0
      %v571 = vsel %vm545, %v531, 0
      %v574 = vsel %vm545, %v532, 0
      %v577 = vsel %vm545, %v533, 0
      %v580 = vsel %vm545, %v534, 0
      %v583 = vsel %vm545, %v535, 0
      %v586 = vsel %vm545, %v536, 0
      %v589 = vsel %vm545, %v537, 0
      %v592 = vsel %vm545, %v538, 0
      %594 = vmatpush.msra.mxu0 0.0
      %595 = vmatpush.msra.mxu0 0.0
      %596 = vmatpush.msra.mxu0 0.0
      %597 = vmatpush.msra.mxu0 0.0
      %598 = vmatpush.msra.mxu0 0.0
      %599 = vmatpush.msra.mxu0 0.0
      %600 = vmatpush.msra.mxu0 0.0
      %601 = vmatpush.msra.mxu0 0.0
      %602 = vmatpush.msra.mxu0 0.0
      %603 = vmatpush.msra.mxu0 0.0
      %604 = vmatpush.msra.mxu0 0.0
      %605 = vmatpush.msra.mxu0 0.0
      %606 = vmatpush.msra.mxu0 0.0
      %607 = vmatpush.msra.mxu0 0.0
      %608 = vmatpush.msra.mxu0 %v540
      %609 = vmatpush.msra.mxu0 %v539
      %610 = vmatmul.f32.gmra.mxu0 %v547
      %v611 = vpop.f32.mrf.mxu0
      %v612 = vadd.f32 %v543, %v611
      %613 = vmatmul.f32.gmra.mxu0 %v550
      %v614 = vpop.f32.mrf.mxu0
      %v615 = vadd.f32 %v543, %v614
      %616 = vmatmul.f32.gmra.mxu0 %v553
      %v617 = vpop.f32.mrf.mxu0
      %v618 = vadd.f32 %v543, %v617
      %619 = vmatmul.f32.gmra.mxu0 %v556
      %v620 = vpop.f32.mrf.mxu0
      %v621 = vadd.f32 %v543, %v620
      %622 = vmatmul.f32.gmra.mxu0 %v559
      %v623 = vpop.f32.mrf.mxu0
      %v624 = vadd.f32 %v543, %v623
      %625 = vmatmul.f32.gmra.mxu0 %v562
      %v626 = vpop.f32.mrf.mxu0
      %v627 = vadd.f32 %v543, %v626
      %628 = vmatmul.f32.gmra.mxu0 %v565
      %v629 = vpop.f32.mrf.mxu0
      %v630 = vadd.f32 %v543, %v629
      %631 = vmatmul.f32.gmra.mxu0 %v568
      %v632 = vpop.f32.mrf.mxu0
      %v633 = vadd.f32 %v543, %v632
      %634 = vmatmul.f32.gmra.mxu0 %v571
      %v635 = vpop.f32.mrf.mxu0
      %v636 = vadd.f32 %v543, %v635
      %637 = vmatmul.f32.gmra.mxu0 %v574
      %v638 = vpop.f32.mrf.mxu0
      %v639 = vadd.f32 %v543, %v638
      %640 = vmatmul.f32.gmra.mxu0 %v577
      %v641 = vpop.f32.mrf.mxu0
      %v642 = vadd.f32 %v543, %v641
      %643 = vmatmul.f32.gmra.mxu0 %v580
      %v644 = vpop.f32.mrf.mxu0
      %v645 = vadd.f32 %v543, %v644
      %646 = vmatmul.f32.gmra.mxu0 %v583
      %v647 = vpop.f32.mrf.mxu0
      %v648 = vadd.f32 %v543, %v647
      %649 = vmatmul.f32.gmra.mxu0 %v586
      %v650 = vpop.f32.mrf.mxu0
      %v651 = vadd.f32 %v543, %v650
      %652 = vmatmul.f32.gmra.mxu0 %v589
      %v653 = vpop.f32.mrf.mxu0
      %v654 = vadd.f32 %v543, %v653
      %655 = vmatmul.f32.gmra.mxu0 %v592
      %v656 = vpop.f32.mrf.mxu0
      %v657 = vadd.f32 %v543, %v656
      %658 = vdwg.mxu0
      %v659 = vld [vmem:[%s377] sm:$0xff]
      %v660 = vld [vmem:[%s377 + $0x8] sm:$0xff]
      %v661 = vld [vmem:[%s377 + $0x10] sm:$0xff]
      %v662 = vld [vmem:[%s377 + $0x18] sm:$0xff]
      %v663 = vld [vmem:[%s377 + $0x20] sm:$0xff]
      %v664 = vld [vmem:[%s377 + $0x28] sm:$0xff]
      %v665 = vld [vmem:[%s377 + $0x30] sm:$0xff]
      %v666 = vld [vmem:[%s377 + $0x38] sm:$0xff]
      %v667 = vld [vmem:[%s377 + $0x40] sm:$0xff]
      %v668 = vld [vmem:[%s377 + $0x48] sm:$0xff]
      %v669 = vld [vmem:[%s377 + $0x50] sm:$0xff]
      %v670 = vld [vmem:[%s377 + $0x58] sm:$0xff]
      %v671 = vld [vmem:[%s377 + $0x60] sm:$0xff]
      %v672 = vld [vmem:[%s377 + $0x68] sm:$0xff]
      %v673 = vld [vmem:[%s377 + $0x70] sm:$0xff]
      %v674 = vld [vmem:[%s377 + $0x78] sm:$0xff]
      %v675 = vmul.f32 %v612, 0.5
      %v676 = vmul.f32 %v615, 0.5
      %v677 = vmul.f32 %v618, 0.5
      %v678 = vmul.f32 %v621, 0.5
      %v679 = vmul.f32 %v624, 0.5
      %v680 = vmul.f32 %v627, 0.5
      %v681 = vmul.f32 %v630, 0.5
      %v682 = vmul.f32 %v633, 0.5
      %v683 = vmul.f32 %v636, 0.5
      %v684 = vmul.f32 %v639, 0.5
      %v685 = vmul.f32 %v642, 0.5
      %v686 = vmul.f32 %v645, 0.5
      %v687 = vmul.f32 %v648, 0.5
      %v688 = vmul.f32 %v651, 0.5
      %v689 = vmul.f32 %v654, 0.5
      %v690 = vmul.f32 %v657, 0.5
      %v691 = vmul.f32 %v675, 1.442695
      %v692 = vpow.pop %v691
      %v693 = vmul.f32 %v676, 1.442695
      %v694 = vpow.pop %v693
      %v695 = vmul.f32 %v677, 1.442695
      %v696 = vpow.pop %v695
      %v697 = vmul.f32 %v678, 1.442695
      %v698 = vpow.pop %v697
      %v699 = vmul.f32 %v679, 1.442695
      %v700 = vpow.pop %v699
      %v701 = vmul.f32 %v680, 1.442695
      %v702 = vpow.pop %v701
      %v703 = vmul.f32 %v681, 1.442695
      %v704 = vpow.pop %v703
      %v705 = vmul.f32 %v682, 1.442695
      %v706 = vpow.pop %v705
      %v707 = vmul.f32 %v683, 1.442695
      %v708 = vpow.pop %v707
      %v709 = vmul.f32 %v684, 1.442695
      %v710 = vpow.pop %v709
      %v711 = vmul.f32 %v685, 1.442695
      %v712 = vpow.pop %v711
      %v713 = vmul.f32 %v686, 1.442695
      %v714 = vpow.pop %v713
      %v715 = vmul.f32 %v687, 1.442695
      %v716 = vpow.pop %v715
      %v717 = vmul.f32 %v688, 1.442695
      %v718 = vpow.pop %v717
      %v719 = vmul.f32 %v689, 1.442695
      %v720 = vpow.pop %v719
      %v721 = vmul.f32 %v690, 1.442695
      %v722 = vpow.pop %v721
      %739 = vrot.lane.b32.xlu0 %v692, 120
      %v740 = vpop.permute.xlu0 %739
      %741 = vrot.lane.b32.xlu0 %v694, 120
      %v742 = vpop.permute.xlu0 %741
      %743 = vrot.lane.b32.xlu0 %v696, 120
      %v744 = vpop.permute.xlu0 %743
      %745 = vrot.lane.b32.xlu0 %v698, 120
      %v746 = vpop.permute.xlu0 %745
      %747 = vrot.lane.b32.xlu0 %v700, 120
      %v748 = vpop.permute.xlu0 %747
      %749 = vrot.lane.b32.xlu0 %v702, 120
      %v750 = vpop.permute.xlu0 %749
      %751 = vrot.lane.b32.xlu0 %v704, 120
      %v752 = vpop.permute.xlu0 %751
      %753 = vrot.lane.b32.xlu0 %v706, 120
      %v754 = vpop.permute.xlu0 %753
      %755 = vrot.lane.b32.xlu0 %v708, 120
      %v756 = vpop.permute.xlu0 %755
      %757 = vrot.lane.b32.xlu0 %v710, 120
      %v758 = vpop.permute.xlu0 %757
      %759 = vrot.lane.b32.xlu0 %v712, 120
      %v760 = vpop.permute.xlu0 %759
      %761 = vrot.lane.b32.xlu0 %v714, 120
      %v762 = vpop.permute.xlu0 %761
      %763 = vrot.lane.b32.xlu0 %v716, 120
      %v764 = vpop.permute.xlu0 %763
      %765 = vrot.lane.b32.xlu0 %v718, 120
      %v766 = vpop.permute.xlu0 %765
      %767 = vrot.lane.b32.xlu0 %v720, 120
      %v768 = vpop.permute.xlu0 %767
      %769 = vrot.lane.b32.xlu0 %v722, 120
      %v770 = vpop.permute.xlu0 %769
      %v787 = vmul.f32 %v659, %v740
      %v788 = vmul.f32 %v660, %v742
      %v789 = vmul.f32 %v661, %v744
      %v790 = vmul.f32 %v662, %v746
      %v791 = vmul.f32 %v663, %v748
      %v792 = vmul.f32 %v664, %v750
      %v793 = vmul.f32 %v665, %v752
      %v794 = vmul.f32 %v666, %v754
      %v795 = vmul.f32 %v667, %v756
      %v796 = vmul.f32 %v668, %v758
      %v797 = vmul.f32 %v669, %v760
      %v798 = vmul.f32 %v670, %v762
      %v799 = vmul.f32 %v671, %v764
      %v800 = vmul.f32 %v672, %v766
      %v801 = vmul.f32 %v673, %v768
      %v802 = vmul.f32 %v674, %v770
      %v803 = vadd.f32 %v787, %v612
      %v804 = vadd.f32 %v788, %v615
      %v805 = vadd.f32 %v789, %v618
      %v806 = vadd.f32 %v790, %v621
      %v807 = vadd.f32 %v791, %v624
      %v808 = vadd.f32 %v792, %v627
      %v809 = vadd.f32 %v793, %v630
      %v810 = vadd.f32 %v794, %v633
      %v811 = vadd.f32 %v795, %v636
      %v812 = vadd.f32 %v796, %v639
      %v813 = vadd.f32 %v797, %v642
      %v814 = vadd.f32 %v798, %v645
      %v815 = vadd.f32 %v799, %v648
      %v816 = vadd.f32 %v800, %v651
      %v817 = vadd.f32 %v801, %v654
      %v818 = vadd.f32 %v802, %v657
      %v819 = vld [vmem:[%s6] sm:$0xff]
      %v820 = vld [vmem:[%s7] sm:$0x1]
      %v822 = vperm.slane %v820, 0
      %vm824 = vcmask 64512
      %v826 = vsel %vm824, %v803, 0
      %v829 = vsel %vm824, %v804, 0
      %v832 = vsel %vm824, %v805, 0
      %v835 = vsel %vm824, %v806, 0
      %v838 = vsel %vm824, %v807, 0
      %v841 = vsel %vm824, %v808, 0
      %v844 = vsel %vm824, %v809, 0
      %v847 = vsel %vm824, %v810, 0
      %v850 = vsel %vm824, %v811, 0
      %v853 = vsel %vm824, %v812, 0
      %v856 = vsel %vm824, %v813, 0
      %v859 = vsel %vm824, %v814, 0
      %v862 = vsel %vm824, %v815, 0
      %v865 = vsel %vm824, %v816, 0
      %v868 = vsel %vm824, %v817, 0
      %v871 = vsel %vm824, %v818, 0
      %873 = vmatpush.msra.mxu0 0.0
      %874 = vmatpush.msra.mxu0 0.0
      %875 = vmatpush.msra.mxu0 0.0
      %876 = vmatpush.msra.mxu0 0.0
      %877 = vmatpush.msra.mxu0 0.0
      %878 = vmatpush.msra.mxu0 0.0
      %879 = vmatpush.msra.mxu0 0.0
      %880 = vmatpush.msra.mxu0 0.0
      %881 = vmatpush.msra.mxu0 0.0
      %882 = vmatpush.msra.mxu0 0.0
      %883 = vmatpush.msra.mxu0 0.0
      %884 = vmatpush.msra.mxu0 0.0
      %885 = vmatpush.msra.mxu0 0.0
      %886 = vmatpush.msra.mxu0 0.0
      %887 = vmatpush.msra.mxu0 0.0
      %888 = vmatpush.msra.mxu0 %v819
      %889 = vmatmul.f32.gmra.mxu0 %v826
      %v890 = vpop.f32.mrf.mxu0
      %v891 = vadd.f32 %v822, %v890
      %892 = vmatmul.f32.gmra.mxu0 %v829
      %v893 = vpop.f32.mrf.mxu0
      %v894 = vadd.f32 %v822, %v893
      %895 = vmatmul.f32.gmra.mxu0 %v832
      %v896 = vpop.f32.mrf.mxu0
      %v897 = vadd.f32 %v822, %v896
      %898 = vmatmul.f32.gmra.mxu0 %v835
      %v899 = vpop.f32.mrf.mxu0
      %v900 = vadd.f32 %v822, %v899
      %901 = vmatmul.f32.gmra.mxu0 %v838
      %v902 = vpop.f32.mrf.mxu0
      %v903 = vadd.f32 %v822, %v902
      %904 = vmatmul.f32.gmra.mxu0 %v841
      %v905 = vpop.f32.mrf.mxu0
      %v906 = vadd.f32 %v822, %v905
      %907 = vmatmul.f32.gmra.mxu0 %v844
      %v908 = vpop.f32.mrf.mxu0
      %v909 = vadd.f32 %v822, %v908
      %910 = vmatmul.f32.gmra.mxu0 %v847
      %v911 = vpop.f32.mrf.mxu0
      %v912 = vadd.f32 %v822, %v911
      %913 = vmatmul.f32.gmra.mxu0 %v850
      %v914 = vpop.f32.mrf.mxu0
      %v915 = vadd.f32 %v822, %v914
      %916 = vmatmul.f32.gmra.mxu0 %v853
      %v917 = vpop.f32.mrf.mxu0
      %v918 = vadd.f32 %v822, %v917
      %919 = vmatmul.f32.gmra.mxu0 %v856
      %v920 = vpop.f32.mrf.mxu0
      %v921 = vadd.f32 %v822, %v920
      %922 = vmatmul.f32.gmra.mxu0 %v859
      %v923 = vpop.f32.mrf.mxu0
      %v924 = vadd.f32 %v822, %v923
      %925 = vmatmul.f32.gmra.mxu0 %v862
      %v926 = vpop.f32.mrf.mxu0
      %v927 = vadd.f32 %v822, %v926
      %928 = vmatmul.f32.gmra.mxu0 %v865
      %v929 = vpop.f32.mrf.mxu0
      %v930 = vadd.f32 %v822, %v929
      %931 = vmatmul.f32.gmra.mxu0 %v868
      %v932 = vpop.f32.mrf.mxu0
      %v933 = vadd.f32 %v822, %v932
      %934 = vmatmul.f32.gmra.mxu0 %v871
      %v935 = vpop.f32.mrf.mxu0
      %v936 = vadd.f32 %v822, %v935
      %937 = vdwg.mxu0
      %v938 = vmax.f32 %v891, 0.0
      %v939 = vmax.f32 %v894, 0.0
      %v940 = vmax.f32 %v897, 0.0
      %v941 = vmax.f32 %v900, 0.0
      %v942 = vmax.f32 %v903, 0.0
      %v943 = vmax.f32 %v906, 0.0
      %v944 = vmax.f32 %v909, 0.0
      %v945 = vmax.f32 %v912, 0.0
      %v946 = vmax.f32 %v915, 0.0
      %v947 = vmax.f32 %v918, 0.0
      %v948 = vmax.f32 %v921, 0.0
      %v949 = vmax.f32 %v924, 0.0
      %v950 = vmax.f32 %v927, 0.0
      %v951 = vmax.f32 %v930, 0.0
      %v952 = vmax.f32 %v933, 0.0
      %v953 = vmax.f32 %v936, 0.0
      %v954 = vld [vmem:[%s8] sm:$0xff]
      %v955 = vld [vmem:[%s8 + $0x8] sm:$0xff]
      %v956 = vld [vmem:[%s9] sm:$0x1]
      %v958 = vperm.slane %v956, 0
      %v961 = vsel %vm545, %v938, 0
      %v964 = vsel %vm545, %v939, 0
      %v967 = vsel %vm545, %v940, 0
      %v970 = vsel %vm545, %v941, 0
      %v973 = vsel %vm545, %v942, 0
      %v976 = vsel %vm545, %v943, 0
      %v979 = vsel %vm545, %v944, 0
      %v982 = vsel %vm545, %v945, 0
      %v985 = vsel %vm545, %v946, 0
      %v988 = vsel %vm545, %v947, 0
      %v991 = vsel %vm545, %v948, 0
      %v994 = vsel %vm545, %v949, 0
      %v997 = vsel %vm545, %v950, 0
      %v1000 = vsel %vm545, %v951, 0
      %v1003 = vsel %vm545, %v952, 0
      %v1006 = vsel %vm545, %v953, 0
      %1008 = vmatpush.msra.mxu0 0.0
      %1009 = vmatpush.msra.mxu0 0.0
      %1010 = vmatpush.msra.mxu0 0.0
      %1011 = vmatpush.msra.mxu0 0.0
      %1012 = vmatpush.msra.mxu0 0.0
      %1013 = vmatpush.msra.mxu0 0.0
      %1014 = vmatpush.msra.mxu0 0.0
      %1015 = vmatpush.msra.mxu0 0.0
      %1016 = vmatpush.msra.mxu0 0.0
      %1017 = vmatpush.msra.mxu0 0.0
      %1018 = vmatpush.msra.mxu0 0.0
      %1019 = vmatpush.msra.mxu0 0.0
      %1020 = vmatpush.msra.mxu0 0.0
      %1021 = vmatpush.msra.mxu0 0.0
      %1022 = vmatpush.msra.mxu0 %v955
      %1023 = vmatpush.msra.mxu0 %v954
      %1024 = vmatmul.f32.gmra.mxu0 %v961
      %v1025 = vpop.f32.mrf.mxu0
      %v1026 = vadd.f32 %v958, %v1025
      %1027 = vmatmul.f32.gmra.mxu0 %v964
      %v1028 = vpop.f32.mrf.mxu0
      %v1029 = vadd.f32 %v958, %v1028
      %1030 = vmatmul.f32.gmra.mxu0 %v967
      %v1031 = vpop.f32.mrf.mxu0
      %v1032 = vadd.f32 %v958, %v1031
      %1033 = vmatmul.f32.gmra.mxu0 %v970
      %v1034 = vpop.f32.mrf.mxu0
      %v1035 = vadd.f32 %v958, %v1034
      %1036 = vmatmul.f32.gmra.mxu0 %v973
      %v1037 = vpop.f32.mrf.mxu0
      %v1038 = vadd.f32 %v958, %v1037
      %1039 = vmatmul.f32.gmra.mxu0 %v976
      %v1040 = vpop.f32.mrf.mxu0
      %v1041 = vadd.f32 %v958, %v1040
      %1042 = vmatmul.f32.gmra.mxu0 %v979
      %v1043 = vpop.f32.mrf.mxu0
      %v1044 = vadd.f32 %v958, %v1043
      %1045 = vmatmul.f32.gmra.mxu0 %v982
      %v1046 = vpop.f32.mrf.mxu0
      %v1047 = vadd.f32 %v958, %v1046
      %1048 = vmatmul.f32.gmra.mxu0 %v985
      %v1049 = vpop.f32.mrf.mxu0
      %v1050 = vadd.f32 %v958, %v1049
      %1051 = vmatmul.f32.gmra.mxu0 %v988
      %v1052 = vpop.f32.mrf.mxu0
      %v1053 = vadd.f32 %v958, %v1052
      %1054 = vmatmul.f32.gmra.mxu0 %v991
      %v1055 = vpop.f32.mrf.mxu0
      %v1056 = vadd.f32 %v958, %v1055
      %1057 = vmatmul.f32.gmra.mxu0 %v994
      %v1058 = vpop.f32.mrf.mxu0
      %v1059 = vadd.f32 %v958, %v1058
      %1060 = vmatmul.f32.gmra.mxu0 %v997
      %v1061 = vpop.f32.mrf.mxu0
      %v1062 = vadd.f32 %v958, %v1061
      %1063 = vmatmul.f32.gmra.mxu0 %v1000
      %v1064 = vpop.f32.mrf.mxu0
      %v1065 = vadd.f32 %v958, %v1064
      %1066 = vmatmul.f32.gmra.mxu0 %v1003
      %v1067 = vpop.f32.mrf.mxu0
      %v1068 = vadd.f32 %v958, %v1067
      %1069 = vmatmul.f32.gmra.mxu0 %v1006
      %v1070 = vpop.f32.mrf.mxu0
      %v1071 = vadd.f32 %v958, %v1070
      %1072 = vdwg.mxu0
      %v1073 = vxor.u32 %v1026, 2147483648
      %v1074 = vxor.u32 %v1029, 2147483648
      %v1075 = vxor.u32 %v1032, 2147483648
      %v1076 = vxor.u32 %v1035, 2147483648
      %v1077 = vxor.u32 %v1038, 2147483648
      %v1078 = vxor.u32 %v1041, 2147483648
      %v1079 = vxor.u32 %v1044, 2147483648
      %v1080 = vxor.u32 %v1047, 2147483648
      %v1081 = vxor.u32 %v1050, 2147483648
      %v1082 = vxor.u32 %v1053, 2147483648
      %v1083 = vxor.u32 %v1056, 2147483648
      %v1084 = vxor.u32 %v1059, 2147483648
      %v1085 = vxor.u32 %v1062, 2147483648
      %v1086 = vxor.u32 %v1065, 2147483648
      %v1087 = vxor.u32 %v1068, 2147483648
      %v1088 = vxor.u32 %v1071, 2147483648
      %v1089 = vmul.f32 %v1073, 1.442695
      %v1090 = vpow.pop %v1089
      %v1091 = vmul.f32 %v1074, 1.442695
      %v1092 = vpow.pop %v1091
      %v1093 = vmul.f32 %v1075, 1.442695
      %v1094 = vpow.pop %v1093
      %v1095 = vmul.f32 %v1076, 1.442695
      %v1096 = vpow.pop %v1095
      %v1097 = vmul.f32 %v1077, 1.442695
      %v1098 = vpow.pop %v1097
      %v1099 = vmul.f32 %v1078, 1.442695
      %v1100 = vpow.pop %v1099
      %v1101 = vmul.f32 %v1079, 1.442695
      %v1102 = vpow.pop %v1101
      %v1103 = vmul.f32 %v1080, 1.442695
      %v1104 = vpow.pop %v1103
      %v1105 = vmul.f32 %v1081, 1.442695
      %v1106 = vpow.pop %v1105
      %v1107 = vmul.f32 %v1082, 1.442695
      %v1108 = vpow.pop %v1107
      %v1109 = vmul.f32 %v1083, 1.442695
      %v1110 = vpow.pop %v1109
      %v1111 = vmul.f32 %v1084, 1.442695
      %v1112 = vpow.pop %v1111
      %v1113 = vmul.f32 %v1085, 1.442695
      %v1114 = vpow.pop %v1113
      %v1115 = vmul.f32 %v1086, 1.442695
      %v1116 = vpow.pop %v1115
      %v1117 = vmul.f32 %v1087, 1.442695
      %v1118 = vpow.pop %v1117
      %v1119 = vmul.f32 %v1088, 1.442695
      %v1120 = vpow.pop %v1119
      %v1121 = vadd.f32 %v1090, 1.0
      %v1122 = vadd.f32 %v1092, 1.0
      %v1123 = vadd.f32 %v1094, 1.0
      %v1124 = vadd.f32 %v1096, 1.0
      %v1125 = vadd.f32 %v1098, 1.0
      %v1126 = vadd.f32 %v1100, 1.0
      %v1127 = vadd.f32 %v1102, 1.0
      %v1128 = vadd.f32 %v1104, 1.0
      %v1129 = vadd.f32 %v1106, 1.0
      %v1130 = vadd.f32 %v1108, 1.0
      %v1131 = vadd.f32 %v1110, 1.0
      %v1132 = vadd.f32 %v1112, 1.0
      %v1133 = vadd.f32 %v1114, 1.0
      %v1134 = vadd.f32 %v1116, 1.0
      %v1135 = vadd.f32 %v1118, 1.0
      %v1136 = vadd.f32 %v1120, 1.0
      %v1137 = vrcp.pop %v1121
      %v1138 = vmul.f32 %v1121, %v1137
      %v1139 = vsub.f32 1.0, %v1138
      %v1140 = vmul.f32 %v1137, %v1139
      %v1141 = vadd.f32 %v1137, %v1140
      %vm1142 = vweird.f32 %v1121
      %vm1143 = vweird.f32 %v1137
      %vm1144 = vmor %vm1142, %vm1143
      %v1145 = vsel %vm1144, %v1137, %v1141
      %v1146 = vand.u32 2147483647, %v1121
      %vm1147 = vcmp.eq.f32.partialorder %v1146, 8.507059e+37
      %v1148 = vand.u32 %v1121, 2147483648
      %v1149 = vor.u32 1.1754944e-38, %v1148
      %v1150 = vsel %vm1147, %v1149, %v1145
      %v1151 = vmul.f32 1.0, %v1150
      %v1152 = vrcp.pop %v1122
      %v1153 = vmul.f32 %v1122, %v1152
      %v1154 = vsub.f32 1.0, %v1153
      %v1155 = vmul.f32 %v1152, %v1154
      %v1156 = vadd.f32 %v1152, %v1155
      %vm1157 = vweird.f32 %v1122
      %vm1158 = vweird.f32 %v1152
      %vm1159 = vmor %vm1157, %vm1158
      %v1160 = vsel %vm1159, %v1152, %v1156
      %v1161 = vand.u32 2147483647, %v1122
      %vm1162 = vcmp.eq.f32.partialorder %v1161, 8.507059e+37
      %v1163 = vand.u32 %v1122, 2147483648
      %v1164 = vor.u32 1.1754944e-38, %v1163
      %v1165 = vsel %vm1162, %v1164, %v1160
      %v1166 = vmul.f32 1.0, %v1165
      %v1167 = vrcp.pop %v1123
      %v1168 = vmul.f32 %v1123, %v1167
      %v1169 = vsub.f32 1.0, %v1168
      %v1170 = vmul.f32 %v1167, %v1169
      %v1171 = vadd.f32 %v1167, %v1170
      %vm1172 = vweird.f32 %v1123
      %vm1173 = vweird.f32 %v1167
      %vm1174 = vmor %vm1172, %vm1173
      %v1175 = vsel %vm1174, %v1167, %v1171
      %v1176 = vand.u32 2147483647, %v1123
      %vm1177 = vcmp.eq.f32.partialorder %v1176, 8.507059e+37
      %v1178 = vand.u32 %v1123, 2147483648
      %v1179 = vor.u32 1.1754944e-38, %v1178
      %v1180 = vsel %vm1177, %v1179, %v1175
      %v1181 = vmul.f32 1.0, %v1180
      %v1182 = vrcp.pop %v1124
      %v1183 = vmul.f32 %v1124, %v1182
      %v1184 = vsub.f32 1.0, %v1183
      %v1185 = vmul.f32 %v1182, %v1184
      %v1186 = vadd.f32 %v1182, %v1185
      %vm1187 = vweird.f32 %v1124
      %vm1188 = vweird.f32 %v1182
      %vm1189 = vmor %vm1187, %vm1188
      %v1190 = vsel %vm1189, %v1182, %v1186
      %v1191 = vand.u32 2147483647, %v1124
      %vm1192 = vcmp.eq.f32.partialorder %v1191, 8.507059e+37
      %v1193 = vand.u32 %v1124, 2147483648
      %v1194 = vor.u32 1.1754944e-38, %v1193
      %v1195 = vsel %vm1192, %v1194, %v1190
      %v1196 = vmul.f32 1.0, %v1195
      %v1197 = vrcp.pop %v1125
      %v1198 = vmul.f32 %v1125, %v1197
      %v1199 = vsub.f32 1.0, %v1198
      %v1200 = vmul.f32 %v1197, %v1199
      %v1201 = vadd.f32 %v1197, %v1200
      %vm1202 = vweird.f32 %v1125
      %vm1203 = vweird.f32 %v1197
      %vm1204 = vmor %vm1202, %vm1203
      %v1205 = vsel %vm1204, %v1197, %v1201
      %v1206 = vand.u32 2147483647, %v1125
      %vm1207 = vcmp.eq.f32.partialorder %v1206, 8.507059e+37
      %v1208 = vand.u32 %v1125, 2147483648
      %v1209 = vor.u32 1.1754944e-38, %v1208
      %v1210 = vsel %vm1207, %v1209, %v1205
      %v1211 = vmul.f32 1.0, %v1210
      %v1212 = vrcp.pop %v1126
      %v1213 = vmul.f32 %v1126, %v1212
      %v1214 = vsub.f32 1.0, %v1213
      %v1215 = vmul.f32 %v1212, %v1214
      %v1216 = vadd.f32 %v1212, %v1215
      %vm1217 = vweird.f32 %v1126
      %vm1218 = vweird.f32 %v1212
      %vm1219 = vmor %vm1217, %vm1218
      %v1220 = vsel %vm1219, %v1212, %v1216
      %v1221 = vand.u32 2147483647, %v1126
      %vm1222 = vcmp.eq.f32.partialorder %v1221, 8.507059e+37
      %v1223 = vand.u32 %v1126, 2147483648
      %v1224 = vor.u32 1.1754944e-38, %v1223
      %v1225 = vsel %vm1222, %v1224, %v1220
      %v1226 = vmul.f32 1.0, %v1225
      %v1227 = vrcp.pop %v1127
      %v1228 = vmul.f32 %v1127, %v1227
      %v1229 = vsub.f32 1.0, %v1228
      %v1230 = vmul.f32 %v1227, %v1229
      %v1231 = vadd.f32 %v1227, %v1230
      %vm1232 = vweird.f32 %v1127
      %vm1233 = vweird.f32 %v1227
      %vm1234 = vmor %vm1232, %vm1233
      %v1235 = vsel %vm1234, %v1227, %v1231
      %v1236 = vand.u32 2147483647, %v1127
      %vm1237 = vcmp.eq.f32.partialorder %v1236, 8.507059e+37
      %v1238 = vand.u32 %v1127, 2147483648
      %v1239 = vor.u32 1.1754944e-38, %v1238
      %v1240 = vsel %vm1237, %v1239, %v1235
      %v1241 = vmul.f32 1.0, %v1240
      %v1242 = vrcp.pop %v1128
      %v1243 = vmul.f32 %v1128, %v1242
      %v1244 = vsub.f32 1.0, %v1243
      %v1245 = vmul.f32 %v1242, %v1244
      %v1246 = vadd.f32 %v1242, %v1245
      %vm1247 = vweird.f32 %v1128
      %vm1248 = vweird.f32 %v1242
      %vm1249 = vmor %vm1247, %vm1248
      %v1250 = vsel %vm1249, %v1242, %v1246
      %v1251 = vand.u32 2147483647, %v1128
      %vm1252 = vcmp.eq.f32.partialorder %v1251, 8.507059e+37
      %v1253 = vand.u32 %v1128, 2147483648
      %v1254 = vor.u32 1.1754944e-38, %v1253
      %v1255 = vsel %vm1252, %v1254, %v1250
      %v1256 = vmul.f32 1.0, %v1255
      %v1257 = vrcp.pop %v1129
      %v1258 = vmul.f32 %v1129, %v1257
      %v1259 = vsub.f32 1.0, %v1258
      %v1260 = vmul.f32 %v1257, %v1259
      %v1261 = vadd.f32 %v1257, %v1260
      %vm1262 = vweird.f32 %v1129
      %vm1263 = vweird.f32 %v1257
      %vm1264 = vmor %vm1262, %vm1263
      %v1265 = vsel %vm1264, %v1257, %v1261
      %v1266 = vand.u32 2147483647, %v1129
      %vm1267 = vcmp.eq.f32.partialorder %v1266, 8.507059e+37
      %v1268 = vand.u32 %v1129, 2147483648
      %v1269 = vor.u32 1.1754944e-38, %v1268
      %v1270 = vsel %vm1267, %v1269, %v1265
      %v1271 = vmul.f32 1.0, %v1270
      %v1272 = vrcp.pop %v1130
      %v1273 = vmul.f32 %v1130, %v1272
      %v1274 = vsub.f32 1.0, %v1273
      %v1275 = vmul.f32 %v1272, %v1274
      %v1276 = vadd.f32 %v1272, %v1275
      %vm1277 = vweird.f32 %v1130
      %vm1278 = vweird.f32 %v1272
      %vm1279 = vmor %vm1277, %vm1278
      %v1280 = vsel %vm1279, %v1272, %v1276
      %v1281 = vand.u32 2147483647, %v1130
      %vm1282 = vcmp.eq.f32.partialorder %v1281, 8.507059e+37
      %v1283 = vand.u32 %v1130, 2147483648
      %v1284 = vor.u32 1.1754944e-38, %v1283
      %v1285 = vsel %vm1282, %v1284, %v1280
      %v1286 = vmul.f32 1.0, %v1285
      %v1287 = vrcp.pop %v1131
      %v1288 = vmul.f32 %v1131, %v1287
      %v1289 = vsub.f32 1.0, %v1288
      %v1290 = vmul.f32 %v1287, %v1289
      %v1291 = vadd.f32 %v1287, %v1290
      %vm1292 = vweird.f32 %v1131
      %vm1293 = vweird.f32 %v1287
      %vm1294 = vmor %vm1292, %vm1293
      %v1295 = vsel %vm1294, %v1287, %v1291
      %v1296 = vand.u32 2147483647, %v1131
      %vm1297 = vcmp.eq.f32.partialorder %v1296, 8.507059e+37
      %v1298 = vand.u32 %v1131, 2147483648
      %v1299 = vor.u32 1.1754944e-38, %v1298
      %v1300 = vsel %vm1297, %v1299, %v1295
      %v1301 = vmul.f32 1.0, %v1300
      %v1302 = vrcp.pop %v1132
      %v1303 = vmul.f32 %v1132, %v1302
      %v1304 = vsub.f32 1.0, %v1303
      %v1305 = vmul.f32 %v1302, %v1304
      %v1306 = vadd.f32 %v1302, %v1305
      %vm1307 = vweird.f32 %v1132
      %vm1308 = vweird.f32 %v1302
      %vm1309 = vmor %vm1307, %vm1308
      %v1310 = vsel %vm1309, %v1302, %v1306
      %v1311 = vand.u32 2147483647, %v1132
      %vm1312 = vcmp.eq.f32.partialorder %v1311, 8.507059e+37
      %v1313 = vand.u32 %v1132, 2147483648
      %v1314 = vor.u32 1.1754944e-38, %v1313
      %v1315 = vsel %vm1312, %v1314, %v1310
      %v1316 = vmul.f32 1.0, %v1315
      %v1317 = vrcp.pop %v1133
      %v1318 = vmul.f32 %v1133, %v1317
      %v1319 = vsub.f32 1.0, %v1318
      %v1320 = vmul.f32 %v1317, %v1319
      %v1321 = vadd.f32 %v1317, %v1320
      %vm1322 = vweird.f32 %v1133
      %vm1323 = vweird.f32 %v1317
      %vm1324 = vmor %vm1322, %vm1323
      %v1325 = vsel %vm1324, %v1317, %v1321
      %v1326 = vand.u32 2147483647, %v1133
      %vm1327 = vcmp.eq.f32.partialorder %v1326, 8.507059e+37
      %v1328 = vand.u32 %v1133, 2147483648
      %v1329 = vor.u32 1.1754944e-38, %v1328
      %v1330 = vsel %vm1327, %v1329, %v1325
      %v1331 = vmul.f32 1.0, %v1330
      %v1332 = vrcp.pop %v1134
      %v1333 = vmul.f32 %v1134, %v1332
      %v1334 = vsub.f32 1.0, %v1333
      %v1335 = vmul.f32 %v1332, %v1334
      %v1336 = vadd.f32 %v1332, %v1335
      %vm1337 = vweird.f32 %v1134
      %vm1338 = vweird.f32 %v1332
      %vm1339 = vmor %vm1337, %vm1338
      %v1340 = vsel %vm1339, %v1332, %v1336
      %v1341 = vand.u32 2147483647, %v1134
      %vm1342 = vcmp.eq.f32.partialorder %v1341, 8.507059e+37
      %v1343 = vand.u32 %v1134, 2147483648
      %v1344 = vor.u32 1.1754944e-38, %v1343
      %v1345 = vsel %vm1342, %v1344, %v1340
      %v1346 = vmul.f32 1.0, %v1345
      %v1347 = vrcp.pop %v1135
      %v1348 = vmul.f32 %v1135, %v1347
      %v1349 = vsub.f32 1.0, %v1348
      %v1350 = vmul.f32 %v1347, %v1349
      %v1351 = vadd.f32 %v1347, %v1350
      %vm1352 = vweird.f32 %v1135
      %vm1353 = vweird.f32 %v1347
      %vm1354 = vmor %vm1352, %vm1353
      %v1355 = vsel %vm1354, %v1347, %v1351
      %v1356 = vand.u32 2147483647, %v1135
      %vm1357 = vcmp.eq.f32.partialorder %v1356, 8.507059e+37
      %v1358 = vand.u32 %v1135, 2147483648
      %v1359 = vor.u32 1.1754944e-38, %v1358
      %v1360 = vsel %vm1357, %v1359, %v1355
      %v1361 = vmul.f32 1.0, %v1360
      %v1362 = vrcp.pop %v1136
      %v1363 = vmul.f32 %v1136, %v1362
      %v1364 = vsub.f32 1.0, %v1363
      %v1365 = vmul.f32 %v1362, %v1364
      %v1366 = vadd.f32 %v1362, %v1365
      %vm1367 = vweird.f32 %v1136
      %vm1368 = vweird.f32 %v1362
      %vm1369 = vmor %vm1367, %vm1368
      %v1370 = vsel %vm1369, %v1362, %v1366
      %v1371 = vand.u32 2147483647, %v1136
      %vm1372 = vcmp.eq.f32.partialorder %v1371, 8.507059e+37
      %v1373 = vand.u32 %v1136, 2147483648
      %v1374 = vor.u32 1.1754944e-38, %v1373
      %v1375 = vsel %vm1372, %v1374, %v1370
      %v1376 = vmul.f32 1.0, %v1375
      %1377 = vst.msk [vmem:[%s383] sm:$0xff] %vm409, %v1151
      %1378 = vst.msk [vmem:[%s383 + $0x8] sm:$0xff] %vm409, %v1166
      %1379 = vst.msk [vmem:[%s383 + $0x10] sm:$0xff] %vm409, %v1181
      %1380 = vst.msk [vmem:[%s383 + $0x18] sm:$0xff] %vm409, %v1196
      %1381 = vst.msk [vmem:[%s383 + $0x20] sm:$0xff] %vm409, %v1211
      %1382 = vst.msk [vmem:[%s383 + $0x28] sm:$0xff] %vm409, %v1226
      %1383 = vst.msk [vmem:[%s383 + $0x30] sm:$0xff] %vm409, %v1241
      %1384 = vst.msk [vmem:[%s383 + $0x38] sm:$0xff] %vm409, %v1256
      %1385 = vst.msk [vmem:[%s383 + $0x40] sm:$0xff] %vm409, %v1271
      %1386 = vst.msk [vmem:[%s383 + $0x48] sm:$0xff] %vm409, %v1286
      %1387 = vst.msk [vmem:[%s383 + $0x50] sm:$0xff] %vm409, %v1301
      %1388 = vst.msk [vmem:[%s383 + $0x58] sm:$0xff] %vm409, %v1316
      %1389 = vst.msk [vmem:[%s383 + $0x60] sm:$0xff] %vm409, %v1331
      %1390 = vst.msk [vmem:[%s383 + $0x68] sm:$0xff] %vm409, %v1346
      %1391 = vst.msk [vmem:[%s383 + $0x70] sm:$0xff] %vm409, %v1361
      %1392 = vst.msk [vmem:[%s383 + $0x78] sm:$0xff] %vm409, %v1376
      %1409 = vrot.lane.b32.xlu0 %v612, 32
      %v1410 = vpop.permute.xlu0 %1409
      %1411 = vrot.lane.b32.xlu0 %v615, 32
      %v1412 = vpop.permute.xlu0 %1411
      %1413 = vrot.lane.b32.xlu0 %v618, 32
      %v1414 = vpop.permute.xlu0 %1413
      %1415 = vrot.lane.b32.xlu0 %v621, 32
      %v1416 = vpop.permute.xlu0 %1415
      %1417 = vrot.lane.b32.xlu0 %v624, 32
      %v1418 = vpop.permute.xlu0 %1417
      %1419 = vrot.lane.b32.xlu0 %v627, 32
      %v1420 = vpop.permute.xlu0 %1419
      %1421 = vrot.lane.b32.xlu0 %v630, 32
      %v1422 = vpop.permute.xlu0 %1421
      %1423 = vrot.lane.b32.xlu0 %v633, 32
      %v1424 = vpop.permute.xlu0 %1423
      %1425 = vrot.lane.b32.xlu0 %v636, 32
      %v1426 = vpop.permute.xlu0 %1425
      %1427 = vrot.lane.b32.xlu0 %v639, 32
      %v1428 = vpop.permute.xlu0 %1427
      %1429 = vrot.lane.b32.xlu0 %v642, 32
      %v1430 = vpop.permute.xlu0 %1429
      %1431 = vrot.lane.b32.xlu0 %v645, 32
      %v1432 = vpop.permute.xlu0 %1431
      %1433 = vrot.lane.b32.xlu0 %v648, 32
      %v1434 = vpop.permute.xlu0 %1433
      %1435 = vrot.lane.b32.xlu0 %v651, 32
      %v1436 = vpop.permute.xlu0 %1435
      %1437 = vrot.lane.b32.xlu0 %v654, 32
      %v1438 = vpop.permute.xlu0 %1437
      %1439 = vrot.lane.b32.xlu0 %v657, 32
      %v1440 = vpop.permute.xlu0 %1439
      %vm1457 = vcmask 326912
      %1458 = vst.msk [vmem:[%s383] sm:$0xff] %vm1457, %v1410
      %1459 = vst.msk [vmem:[%s383 + $0x8] sm:$0xff] %vm1457, %v1412
      %1460 = vst.msk [vmem:[%s383 + $0x10] sm:$0xff] %vm1457, %v1414
      %1461 = vst.msk [vmem:[%s383 + $0x18] sm:$0xff] %vm1457, %v1416
      %1462 = vst.msk [vmem:[%s383 + $0x20] sm:$0xff] %vm1457, %v1418
      %1463 = vst.msk [vmem:[%s383 + $0x28] sm:$0xff] %vm1457, %v1420
      %1464 = vst.msk [vmem:[%s383 + $0x30] sm:$0xff] %vm1457, %v1422
      %1465 = vst.msk [vmem:[%s383 + $0x38] sm:$0xff] %vm1457, %v1424
      %1466 = vst.msk [vmem:[%s383 + $0x40] sm:$0xff] %vm1457, %v1426
      %1467 = vst.msk [vmem:[%s383 + $0x48] sm:$0xff] %vm1457, %v1428
      %1468 = vst.msk [vmem:[%s383 + $0x50] sm:$0xff] %vm1457, %v1430
      %1469 = vst.msk [vmem:[%s383 + $0x58] sm:$0xff] %vm1457, %v1432
      %1470 = vst.msk [vmem:[%s383 + $0x60] sm:$0xff] %vm1457, %v1434
      %1471 = vst.msk [vmem:[%s383 + $0x68] sm:$0xff] %vm1457, %v1436
      %1472 = vst.msk [vmem:[%s383 + $0x70] sm:$0xff] %vm1457, %v1438
      %1473 = vst.msk [vmem:[%s383 + $0x78] sm:$0xff] %vm1457, %v1440
      %vm1474 = vcmask 392512
      %1475 = vst.msk [vmem:[%s383] sm:$0xff] %vm1474, %v1410
      %1476 = vst.msk [vmem:[%s383 + $0x8] sm:$0xff] %vm1474, %v1412
      %1477 = vst.msk [vmem:[%s383 + $0x10] sm:$0xff] %vm1474, %v1414
      %1478 = vst.msk [vmem:[%s383 + $0x18] sm:$0xff] %vm1474, %v1416
      %1479 = vst.msk [vmem:[%s383 + $0x20] sm:$0xff] %vm1474, %v1418
      %1480 = vst.msk [vmem:[%s383 + $0x28] sm:$0xff] %vm1474, %v1420
      %1481 = vst.msk [vmem:[%s383 + $0x30] sm:$0xff] %vm1474, %v1422
      %1482 = vst.msk [vmem:[%s383 + $0x38] sm:$0xff] %vm1474, %v1424
      %1483 = vst.msk [vmem:[%s383 + $0x40] sm:$0xff] %vm1474, %v1426
      %1484 = vst.msk [vmem:[%s383 + $0x48] sm:$0xff] %vm1474, %v1428
      %1485 = vst.msk [vmem:[%s383 + $0x50] sm:$0xff] %vm1474, %v1430
      %1486 = vst.msk [vmem:[%s383 + $0x58] sm:$0xff] %vm1474, %v1432
      %1487 = vst.msk [vmem:[%s383 + $0x60] sm:$0xff] %vm1474, %v1434
      %1488 = vst.msk [vmem:[%s383 + $0x68] sm:$0xff] %vm1474, %v1436
      %1489 = vst.msk [vmem:[%s383 + $0x70] sm:$0xff] %vm1474, %v1438
      %1490 = vst.msk [vmem:[%s383 + $0x78] sm:$0xff] %vm1474, %v1440
      %s1491 = smul.u32 16, %s21
      %p1492 = scmp.lt.s32.totalorder %s1491, 31
      %s1493 = scalar_select %p1492, %s1491, 31
      %s1494 = smul.addr %s1493, 8
      %s1495 = scalar_lea.vmem %s10, %s1494
      // Predicated region
      $region61: #{tpu_custom_call.1} parent=59 // pred_check
        %p1496 = pneg %p259
      $region62: #{tpu_custom_call.1} parent=59 // pred_check_branch
        %1498 = sbr.rel (%p1496) target = $region64
      $region63: #{tpu_custom_call.1} parent=59 // pred_region
        %s1499 = smul.u32 16, %s21
      $region64: #{tpu_custom_call.1} parent=59 // pred_fallthru
        _
    $region60: #{tpu_custom_call.1} parent=5 // pred_fallthru
      _
    %p1500 = scmp.le.s32.totalorder 2, %s16
    // Predicated region
    $region65: #{tpu_custom_call.1} parent=5 // pred_check
      %p1501 = pneg %p1500
    $region66: #{tpu_custom_call.1} parent=5 // pred_check_branch
      %1503 = sbr.rel (%p1501) target = $region68
    $region67: #{tpu_custom_call.1} parent=5 // pred_region
      %s1504 = ssub.s32 %s16, 2
      // Predicated region
      $region69: #{tpu_custom_call.1} parent=67 // pred_check
        %p1505 = pneg %p265
      $region70: #{tpu_custom_call.1} parent=67 // pred_check_branch
        %1507 = sbr.rel (%p1505) target = $region72
      $region71: #{tpu_custom_call.1} parent=67 // pred_region
        %s1508 = smul.u32 16, %s22
        %p1509 = scmp.lt.s32.totalorder %s1508, 31
        %s1510 = scalar_select %p1509, %s1508, 31
        %s1511 = smul.addr %s1510, 8
        %s1512 = scalar_lea.vmem %s10, %s1511
      $region72: #{tpu_custom_call.1} parent=67 // pred_fallthru
        _
    $region68: #{tpu_custom_call.1} parent=5 // pred_fallthru
      _
  $region6: #{tpu_custom_call.1} parent=0 // loop_footer
    %s20 = sadd.s32 1, %s16
  $region7: #{tpu_custom_call.1} parent=0 // loop_footer_branch
    %15 = sbr.rel target = $region3
  $region8: #{tpu_custom_call.1} parent=0 // loop_exit
    _

</llo_original>
